<compile_context>
chip_gen: v6e
topology: v6e:2x2x1
jax: 0.10.0
libtpu: 0.0.40
codegen_flags: <defaults>
</compile_context>

<pallas_src>
import math
from functools import partial

import jax
import jax.numpy as jnp
from jax.experimental import pallas as pl
from jax.experimental.pallas import tpu as pltpu

# ----------------------------- model config (small, synthetic) ---------------
B = 2              # batch
L = 8              # sequence length
D = 32             # hidden_size
H = 4              # num_attention_heads
HKV = 2            # num_multi_query_heads
HD = D // H        # head_dim = 8
GROUP = H // HKV   # query heads per kv head = 2
I = 64             # intermediate_size
KVD = HKV * HD     # per-token kv width = 16
QKV = D + 2 * KVD  # qkv_size = 64
EPS = 1e-5
ROPE_BASE = 500000.0
NEG_INF = -1e30


# ------------------------------- kernel ---------------------------------------
def _decoder_layer_kernel(x_ref, cos_ref, sin_ref,
                          ln1_ref, wqkv_ref, wdense_ref,
                          ln2_ref, wgu_ref, wdown_ref,
                          out_ref, *, nb):
    T = nb * L
    x = x_ref[...].reshape(T, D)                    # f32, all nb items token-flat

    # ---- input RMSNorm (f32, as in the PyTorch module) -----------------------
    var = jnp.mean(x * x, axis=-1, keepdims=True)
    xn = (x * jax.lax.rsqrt(var + EPS) * ln1_ref[...]).astype(jnp.bfloat16)

    # ---- fused QKV projection (bf16 MXU, f32 accumulate) ----------------------
    # 1/sqrt(HD) is folded into the Q columns of the (bf16) weight.
    qkv = jnp.dot(xn, wqkv_ref[...], preferred_element_type=jnp.float32)  # (T, QKV)
    q = qkv[:, :D]
    k = qkv[:, D:D + KVD]
    v = qkv[:, D + KVD:]

    # ---- RoPE helpers ----------------------------------------------------------
    cos = cos_ref[...]                              # (L, HD)
    sinf = sin_ref[...]                             # (L, HD), rotate-half sign folded
    half = HD // 2

    def rope(t):                                    # t: (..., L, HD), f32
        # half-rotation of the HD lane axis (equivalent to rotate-half; the
        # sign lives in sinf), then a plain FMA against the tables.
        rot = jnp.concatenate([t[..., half:], t[..., :half]], axis=-1)
        return t * cos + rot * sinf

    # causal mask generated in-kernel (no (T,T) HBM table)
    row = jax.lax.broadcasted_iota(jnp.int32, (L, L), 0)
    col = jax.lax.broadcasted_iota(jnp.int32, (L, L), 1)
    causal = (col <= row)[None]                     # (1, L, L)

    # ---- per-batch-item GQA attention (static unroll over nb) -----------------
    attn_rows = []
    for b in range(nb):
        r0 = b * L
        qb = q[r0:r0 + L]                           # (L, D)
        kb = k[r0:r0 + L]                           # (L, KVD)
        vb = v[r0:r0 + L]

        qh = rope(jnp.stack([qb[:, h * HD:(h + 1) * HD] for h in range(H)],
                            axis=0))                                  # (H,   L, HD)
        kh = rope(jnp.stack([kb[:, g * HD:(g + 1) * HD] for g in range(HKV)],
                            axis=0))                                  # (HKV, L, HD)
        vh = jnp.stack([vb[:, g * HD:(g + 1) * HD] for g in range(HKV)],
                       axis=0)                                        # (HKV, L, HD)

        # GQA: replicate KV heads over the query group (one broadcast, no gathers)
        kg = jnp.broadcast_to(kh[:, None], (HKV, GROUP, L, HD)).reshape(H, L, HD)
        vg = jnp.broadcast_to(vh[:, None], (HKV, GROUP, L, HD)).reshape(H, L, HD)

        scores = jnp.einsum('htd,hsd->hts',
                            qh.astype(jnp.bfloat16), kg.astype(jnp.bfloat16),
                            preferred_element_type=jnp.float32)       # (H, L, L)
        scores = jnp.where(causal, scores, NEG_INF)
        m = jnp.max(scores, axis=-1, keepdims=True)
        p = jnp.exp(scores - m)
        p = p * pl.reciprocal(jnp.sum(p, axis=-1, keepdims=True), approx=True)
        ctx = jnp.einsum('hts,hsd->htd',
                         p.astype(jnp.bfloat16), vg.astype(jnp.bfloat16),
                         preferred_element_type=jnp.float32)          # (H, L, HD)

        # output projection as head-batched partials (avoids the lane concat):
        # sum_h ctx[h] @ Wdense[h*HD:(h+1)*HD, :]  ==  concat_h(ctx[h]) @ Wdense
        partial_o = jnp.einsum('htd,hde->hte',
                               ctx.astype(jnp.bfloat16), wdense_ref[...],
                               preferred_element_type=jnp.float32)    # (H, L, D)
        attn_rows.append(jnp.sum(partial_o, axis=0))                  # (L, D)

    attn_out = jnp.concatenate(attn_rows, axis=0)                     # (T, D)
    h1 = x + attn_out                                                 # residual 1

    # ---- post-attention RMSNorm + SwiGLU MLP ----------------------------------
    var2 = jnp.mean(h1 * h1, axis=-1, keepdims=True)
    hn = (h1 * jax.lax.rsqrt(var2 + EPS) * ln2_ref[...]).astype(jnp.bfloat16)
    gu = jnp.dot(hn, wgu_ref[...], preferred_element_type=jnp.float32)   # (T, 2I)
    act = (jax.nn.silu(gu[:, :I]) * gu[:, I:]).astype(jnp.bfloat16)
    down = jnp.dot(act, wdown_ref[...], preferred_element_type=jnp.float32)
    out_ref[...] = (h1 + down).reshape(nb, L, D)                      # residual 2


# --------------------------- parameter folding --------------------------------
def fold_params(params):
    """Fold the 1/sqrt(HD) scale into the Q weight, fuse gate|up, head-split the
    dense weight, and store all matmul weights in bf16."""
    ln1, wqkv, wdense, ln2, wgate, wup, wdown = params
    scale = 1.0 / math.sqrt(HD)
    wqkv_scaled = jnp.concatenate([wqkv[:, :D] * scale, wqkv[:, D:]], axis=1)
    w_dense3 = wdense.reshape(H, HD, D)            # rows are head-major: h*HD + d
    w_gu = jnp.concatenate([wgate, wup], axis=1)   # (D, 2I)
    return (ln1.reshape(1, D),
            wqkv_scaled.astype(jnp.bfloat16),
            w_dense3.astype(jnp.bfloat16),
            ln2.reshape(1, D),
            w_gu.astype(jnp.bfloat16),
            wdown.astype(jnp.bfloat16))


def make_rope_tables(seq_len):
    """Rotary tables for position_ids = arange(seq_len); base = 500000.
    Returns (cos, sin, sin_fold) with shape (seq_len, HD); sin_fold carries the
    rotate-half sign so the kernel RoPE is a pure FMA after a half-rotation."""
    pos = jnp.arange(seq_len, dtype=jnp.float32)
    inv_freq = 1.0 / (ROPE_BASE ** (jnp.arange(0, HD, 2, dtype=jnp.float32) / HD))
    freqs = pos[:, None] * inv_freq[None, :]
    emb = jnp.concatenate([freqs, freqs], axis=-1)          # (seq_len, HD)
    cos, sin = jnp.cos(emb), jnp.sin(emb)
    half = HD // 2
    sin_fold = jnp.concatenate([-sin[:, :half], sin[:, half:]], axis=-1)
    return cos, sin, sin_fold


# ------------------------------- wrapper ---------------------------------------
@partial(jax.jit, static_argnames=("batch_block",))
def cogvlm_decoder_layer(x, cos, sin_fold, folded_params, *, batch_block=None):
    ln1, w_qkv, w_dense3, ln2, w_gu, w_down = folded_params
    batch = x.shape[0]
    # Default: one grid step over the whole (tiny) batch -> no per-step overhead.
    # At production sizes pass batch_block = batch // num_tensorcores to split
    # the batch across cores (the batch axis is genuinely parallel).
    nb = batch if batch_block is None else batch_block
    assert batch % nb == 0

    const = lambda shape: pl.BlockSpec(shape, lambda g: (0,) * len(shape))
    return pl.pallas_call(
        partial(_decoder_layer_kernel, nb=nb),
        out_shape=jax.ShapeDtypeStruct((batch, L, D), jnp.float32),
        grid_spec=pltpu.PrefetchScalarGridSpec(
            num_scalar_prefetch=0,
            grid=(batch // nb,),
            in_specs=[
                pl.BlockSpec((nb, L, D), lambda g: (g, 0, 0)),   # x
                const((L, HD)),                                  # cos (un-tiled)
                const((L, HD)),                                  # sin (sign-folded)
                const((1, D)),                                   # ln1 (f32)
                const((D, QKV)),                                 # w_qkv (bf16, q scaled)
                const((H, HD, D)),                               # w_dense (bf16, head-split)
                const((1, D)),                                   # ln2 (f32)
                const((D, 2 * I)),                               # w_gate|w_up (bf16)
                const((I, D)),                                   # w_down (bf16)
            ],
            out_specs=pl.BlockSpec((nb, L, D), lambda g: (g, 0, 0)),
        ),
        compiler_params=pltpu.CompilerParams(
            dimension_semantics=("parallel",)),
    )(x, cos, sin_fold, ln1, w_qkv, w_dense3, ln2, w_gu, w_down)


# --------------------------- pure-JAX reference --------------------------------
def reference(x, mask, cos, sin, params):
    ln1, wqkv, wdense, ln2, wgate, wup, wdown = params

    def rms(h, w):
        v = jnp.mean(h * h, axis=-1, keepdims=True)
        return h * jax.lax.rsqrt(v + EPS) * w

    def rope(t, c, s):
        half = HD // 2
        rot = jnp.concatenate([-t[..., half:], t[..., :half]], axis=-1)
        return t * c + rot * s

    xn = rms(x, ln1)
    qkv = xn @ wqkv
    q = qkv[..., :D].reshape(B, L, H, HD).transpose(0, 2, 1, 3)
    k = qkv[..., D:D + KVD].reshape(B, L, HKV, HD).transpose(0, 2, 1, 3)
    v = qkv[..., D + KVD:].reshape(B, L, HKV, HD).transpose(0, 2, 1, 3)
    q = rope(q, cos[None, None], sin[None, None])
    k = rope(k, cos[None, None], sin[None, None])
    k = jnp.repeat(k, GROUP, axis=1)
    v = jnp.repeat(v, GROUP, axis=1)
    scores = jnp.einsum('bhld,bhmd->bhlm', q / math.sqrt(HD), k) + mask[None, None]
    p = jax.nn.softmax(scores, axis=-1)
    ctx = jnp.einsum('bhlm,bhmd->bhld', p, v).transpose(0, 2, 1, 3).reshape(B, L, D)
    h1 = x + ctx @ wdense
    hn = rms(h1, ln2)
    return h1 + (jax.nn.silu(hn @ wgate) * (hn @ wup)) @ wdown


if __name__ == "__main__":
    key = jax.random.PRNGKey(0)
    keys = jax.random.split(key, 8)

    x = jax.random.normal(keys[0], (B, L, D), dtype=jnp.float32)
    cos, sin, sin_fold = make_rope_tables(L)

    s = 0.05
    params = (
        jnp.ones((D,), dtype=jnp.float32),                                  # ln1
        s * jax.random.normal(keys[1], (D, QKV), dtype=jnp.float32),        # wqkv
        s * jax.random.normal(keys[2], (D, D), dtype=jnp.float32),          # dense
        jnp.ones((D,), dtype=jnp.float32),                                  # ln2
        s * jax.random.normal(keys[3], (D, I), dtype=jnp.float32),          # gate
        s * jax.random.normal(keys[4], (D, I), dtype=jnp.float32),          # up
        s * jax.random.normal(keys[5], (I, D), dtype=jnp.float32),          # down
    )
    folded = fold_params(params)

    out = cogvlm_decoder_layer(x, cos, sin_fold, folded)
    out = jax.block_until_ready(out)

    # f32 reference with an explicit causal additive mask (module semantics)
    causal = jnp.tril(jnp.ones((L, L), dtype=jnp.float32))
    mask = jnp.where(causal > 0, 0.0, NEG_INF).astype(jnp.float32)
    ref = reference(x, mask, cos, sin, params)

    assert out.shape == (B, L, D)
    err = jnp.max(jnp.abs(out - ref))
    # tolerance covers bf16 matmul operands + approximate (EUP) softmax reciprocal
    assert jnp.allclose(out, ref, rtol=2e-2, atol=2e-2), f"max err {err}"
    print("KERNEL_OK")
</pallas_src>

<mosaic_0001>
module attributes {stable_mosaic.version = 11 : i64} {
  func.func @_decoder_layer_kernel(%arg0: i32, %arg1: memref<2x8x32xf32, #tpu.memory_space<vmem>>, %arg2: memref<8x8xf32, #tpu.memory_space<vmem>>, %arg3: memref<8x8xf32, #tpu.memory_space<vmem>>, %arg4: memref<1x32xf32, #tpu.memory_space<vmem>>, %arg5: memref<32x64xbf16, #tpu.memory_space<vmem>>, %arg6: memref<4x8x32xbf16, #tpu.memory_space<vmem>>, %arg7: memref<1x32xf32, #tpu.memory_space<vmem>>, %arg8: memref<32x128xbf16, #tpu.memory_space<vmem>>, %arg9: memref<64x32xbf16, #tpu.memory_space<vmem>>, %arg10: memref<2x8x32xf32, #tpu.memory_space<vmem>>) attributes {dimension_semantics = [#tpu.dimension_semantics<parallel>], iteration_bounds = array<i64: 1>, scalar_prefetch = 0 : i64, scratch_operands = 0 : i64, tpu.core_type = #tpu.core_type<tc>, window_params = [{transform_indices = @transform_0, window_bounds = array<i64: 2, 8, 32>}, {pipeline_mode = #tpu.pipeline_mode<synchronous>, transform_indices = @transform_1, window_bounds = array<i64: 8, 8>}, {pipeline_mode = #tpu.pipeline_mode<synchronous>, transform_indices = @transform_2, window_bounds = array<i64: 8, 8>}, {pipeline_mode = #tpu.pipeline_mode<synchronous>, transform_indices = @transform_3, window_bounds = array<i64: 1, 32>}, {pipeline_mode = #tpu.pipeline_mode<synchronous>, transform_indices = @transform_4, window_bounds = array<i64: 32, 64>}, {pipeline_mode = #tpu.pipeline_mode<synchronous>, transform_indices = @transform_5, window_bounds = array<i64: 4, 8, 32>}, {pipeline_mode = #tpu.pipeline_mode<synchronous>, transform_indices = @transform_6, window_bounds = array<i64: 1, 32>}, {pipeline_mode = #tpu.pipeline_mode<synchronous>, transform_indices = @transform_7, window_bounds = array<i64: 32, 128>}, {pipeline_mode = #tpu.pipeline_mode<synchronous>, transform_indices = @transform_8, window_bounds = array<i64: 64, 32>}, {transform_indices = @transform_9, window_bounds = array<i64: 2, 8, 32>}]} {
    %c0 = arith.constant 0 : index
    %c0_0 = arith.constant 0 : index
    %c0_1 = arith.constant 0 : index
    %0 = vector.load %arg1[%c0, %c0_0, %c0_1] : memref<2x8x32xf32, #tpu.memory_space<vmem>>, vector<2x8x32xf32>
    %1 = vector.shape_cast %0 : vector<2x8x32xf32> to vector<16x32xf32>
    %2 = arith.mulf %1, %1 : vector<16x32xf32>
    %cst = arith.constant dense<0.000000e+00> : vector<16xf32>
    %3 = vector.multi_reduction <add>, %2, %cst [1] : vector<16x32xf32> to vector<16xf32>
    %4 = vector.shape_cast %3 : vector<16xf32> to vector<16x1xf32>
    %cst_2 = arith.constant 3.200000e+01 : f32
    %5 = vector.broadcast %cst_2 : f32 to vector<16x1xf32>
    %6 = arith.divf %4, %5 : vector<16x1xf32>
    %cst_3 = arith.constant 9.99999974E-6 : f32
    %7 = vector.broadcast %cst_3 : f32 to vector<16x1xf32>
    %8 = arith.addf %6, %7 : vector<16x1xf32>
    %9 = math.rsqrt %8 : vector<16x1xf32>
    %10 = vector.broadcast %9 : vector<16x1xf32> to vector<16x32xf32>
    %11 = arith.mulf %1, %10 : vector<16x32xf32>
    %c0_4 = arith.constant 0 : index
    %c0_5 = arith.constant 0 : index
    %12 = vector.load %arg4[%c0_4, %c0_5] : memref<1x32xf32, #tpu.memory_space<vmem>>, vector<1x32xf32>
    %13 = vector.broadcast %12 : vector<1x32xf32> to vector<16x32xf32>
    %14 = arith.mulf %11, %13 : vector<16x32xf32>
    %15 = arith.truncf %14 : vector<16x32xf32> to vector<16x32xbf16>
    %c0_6 = arith.constant 0 : index
    %c0_7 = arith.constant 0 : index
    %16 = vector.load %arg5[%c0_6, %c0_7] : memref<32x64xbf16, #tpu.memory_space<vmem>>, vector<32x64xbf16>
    %cst_8 = arith.constant dense<0.000000e+00> : vector<16x64xf32>
    %17 = tpu.matmul %15, %16, %cst_8 {dimension_numbers = #tpu.dot_dimension_numbers<[1], [0], [0], [1], [0, 0, 1, 1], [], []>} : vector<16x32xbf16>, vector<32x64xbf16>, vector<16x64xf32> -> vector<16x64xf32>
    %18 = vector.extract_strided_slice %17 {offsets = [0, 0], sizes = [16, 32], strides = [1, 1]} : vector<16x64xf32> to vector<16x32xf32>
    %19 = vector.extract_strided_slice %17 {offsets = [0, 32], sizes = [16, 16], strides = [1, 1]} : vector<16x64xf32> to vector<16x16xf32>
    %20 = vector.extract_strided_slice %17 {offsets = [0, 48], sizes = [16, 16], strides = [1, 1]} : vector<16x64xf32> to vector<16x16xf32>
    %c0_9 = arith.constant 0 : index
    %c0_10 = arith.constant 0 : index
    %21 = vector.load %arg2[%c0_9, %c0_10] : memref<8x8xf32, #tpu.memory_space<vmem>>, vector<8x8xf32>
    %c0_11 = arith.constant 0 : index
    %c0_12 = arith.constant 0 : index
    %22 = vector.load %arg3[%c0_11, %c0_12] : memref<8x8xf32, #tpu.memory_space<vmem>>, vector<8x8xf32>
    %23 = tpu.iota {dimensions = array<i32: 0>} : vector<8x8xi32>
    %24 = tpu.iota {dimensions = array<i32: 1>} : vector<8x8xi32>
    %25 = arith.cmpi sle, %24, %23 : vector<8x8xi32>
    %26 = vector.shape_cast %25 : vector<8x8xi1> to vector<1x8x8xi1>
    %27 = vector.extract_strided_slice %18 {offsets = [0, 0], sizes = [8, 32], strides = [1, 1]} : vector<16x32xf32> to vector<8x32xf32>
    %28 = vector.extract_strided_slice %19 {offsets = [0, 0], sizes = [8, 16], strides = [1, 1]} : vector<16x16xf32> to vector<8x16xf32>
    %29 = vector.extract_strided_slice %20 {offsets = [0, 0], sizes = [8, 16], strides = [1, 1]} : vector<16x16xf32> to vector<8x16xf32>
    %30 = vector.extract_strided_slice %27 {offsets = [0, 0], sizes = [8, 8], strides = [1, 1]} : vector<8x32xf32> to vector<8x8xf32>
    %31 = vector.extract_strided_slice %27 {offsets = [0, 8], sizes = [8, 8], strides = [1, 1]} : vector<8x32xf32> to vector<8x8xf32>
    %32 = vector.extract_strided_slice %27 {offsets = [0, 16], sizes = [8, 8], strides = [1, 1]} : vector<8x32xf32> to vector<8x8xf32>
    %33 = vector.extract_strided_slice %27 {offsets = [0, 24], sizes = [8, 8], strides = [1, 1]} : vector<8x32xf32> to vector<8x8xf32>
    %34 = vector.shape_cast %30 : vector<8x8xf32> to vector<1x8x8xf32>
    %35 = vector.shape_cast %31 : vector<8x8xf32> to vector<1x8x8xf32>
    %36 = vector.shape_cast %32 : vector<8x8xf32> to vector<1x8x8xf32>
    %37 = vector.shape_cast %33 : vector<8x8xf32> to vector<1x8x8xf32>
    %38 = tpu.concatenate %34, %35, %36, %37 in 0 : vector<1x8x8xf32>, vector<1x8x8xf32>, vector<1x8x8xf32>, vector<1x8x8xf32> -> vector<4x8x8xf32>
    %39 = vector.extract_strided_slice %38 {offsets = [0, 0, 4], sizes = [4, 8, 4], strides = [1, 1, 1]} : vector<4x8x8xf32> to vector<4x8x4xf32>
    %40 = vector.extract_strided_slice %38 {offsets = [0, 0, 0], sizes = [4, 8, 4], strides = [1, 1, 1]} : vector<4x8x8xf32> to vector<4x8x4xf32>
    %41 = tpu.concatenate %39, %40 in 2 : vector<4x8x4xf32>, vector<4x8x4xf32> -> vector<4x8x8xf32>
    %42 = vector.shape_cast %21 : vector<8x8xf32> to vector<1x8x8xf32>
    %43 = vector.broadcast %42 : vector<1x8x8xf32> to vector<4x8x8xf32>
    %44 = arith.mulf %38, %43 : vector<4x8x8xf32>
    %45 = vector.shape_cast %22 : vector<8x8xf32> to vector<1x8x8xf32>
    %46 = vector.broadcast %45 : vector<1x8x8xf32> to vector<4x8x8xf32>
    %47 = arith.mulf %41, %46 : vector<4x8x8xf32>
    %48 = arith.addf %44, %47 : vector<4x8x8xf32>
    %49 = vector.extract_strided_slice %28 {offsets = [0, 0], sizes = [8, 8], strides = [1, 1]} : vector<8x16xf32> to vector<8x8xf32>
    %50 = vector.extract_strided_slice %28 {offsets = [0, 8], sizes = [8, 8], strides = [1, 1]} : vector<8x16xf32> to vector<8x8xf32>
    %51 = vector.shape_cast %49 : vector<8x8xf32> to vector<1x8x8xf32>
    %52 = vector.shape_cast %50 : vector<8x8xf32> to vector<1x8x8xf32>
    %53 = tpu.concatenate %51, %52 in 0 : vector<1x8x8xf32>, vector<1x8x8xf32> -> vector<2x8x8xf32>
    %54 = vector.extract_strided_slice %53 {offsets = [0, 0, 4], sizes = [2, 8, 4], strides = [1, 1, 1]} : vector<2x8x8xf32> to vector<2x8x4xf32>
    %55 = vector.extract_strided_slice %53 {offsets = [0, 0, 0], sizes = [2, 8, 4], strides = [1, 1, 1]} : vector<2x8x8xf32> to vector<2x8x4xf32>
    %56 = tpu.concatenate %54, %55 in 2 : vector<2x8x4xf32>, vector<2x8x4xf32> -> vector<2x8x8xf32>
    %57 = vector.shape_cast %21 : vector<8x8xf32> to vector<1x8x8xf32>
    %58 = vector.broadcast %57 : vector<1x8x8xf32> to vector<2x8x8xf32>
    %59 = arith.mulf %53, %58 : vector<2x8x8xf32>
    %60 = vector.shape_cast %22 : vector<8x8xf32> to vector<1x8x8xf32>
    %61 = vector.broadcast %60 : vector<1x8x8xf32> to vector<2x8x8xf32>
    %62 = arith.mulf %56, %61 : vector<2x8x8xf32>
    %63 = arith.addf %59, %62 : vector<2x8x8xf32>
    %64 = vector.extract_strided_slice %29 {offsets = [0, 0], sizes = [8, 8], strides = [1, 1]} : vector<8x16xf32> to vector<8x8xf32>
    %65 = vector.extract_strided_slice %29 {offsets = [0, 8], sizes = [8, 8], strides = [1, 1]} : vector<8x16xf32> to vector<8x8xf32>
    %66 = vector.shape_cast %64 : vector<8x8xf32> to vector<1x8x8xf32>
    %67 = vector.shape_cast %65 : vector<8x8xf32> to vector<1x8x8xf32>
    %68 = tpu.concatenate %66, %67 in 0 : vector<1x8x8xf32>, vector<1x8x8xf32> -> vector<2x8x8xf32>
    %69 = vector.shape_cast %63 : vector<2x8x8xf32> to vector<2x1x8x8xf32>
    %70 = vector.shape_cast %69 : vector<2x1x8x8xf32> to vector<2x1x8x8xf32>
    %71 = vector.broadcast %70 : vector<2x1x8x8xf32> to vector<2x2x8x8xf32>
    %72 = vector.shape_cast %71 : vector<2x2x8x8xf32> to vector<4x8x8xf32>
    %73 = vector.shape_cast %68 : vector<2x8x8xf32> to vector<2x1x8x8xf32>
    %74 = vector.shape_cast %73 : vector<2x1x8x8xf32> to vector<2x1x8x8xf32>
    %75 = vector.broadcast %74 : vector<2x1x8x8xf32> to vector<2x2x8x8xf32>
    %76 = vector.shape_cast %75 : vector<2x2x8x8xf32> to vector<4x8x8xf32>
    %77 = arith.truncf %48 : vector<4x8x8xf32> to vector<4x8x8xbf16>
    %78 = arith.truncf %72 : vector<4x8x8xf32> to vector<4x8x8xbf16>
    "tpu.trace_start"() <{level = 10 : i32, message = "htd,hsd->hts"}> : () -> ()
    %cst_13 = arith.constant dense<0.000000e+00> : vector<4x8x8xf32>
    %79 = tpu.matmul %77, %78, %cst_13 {dimension_numbers = #tpu.dot_dimension_numbers<[2], [2], [1], [1], [0, 0, 0, 1, 1, 1], [0], [0]>} : vector<4x8x8xbf16>, vector<4x8x8xbf16>, vector<4x8x8xf32> -> vector<4x8x8xf32>
    %cst_14 = arith.constant -1.000000e+30 : f32
    "tpu.trace_stop"() : () -> ()
    %80 = vector.shape_cast %26 : vector<1x8x8xi1> to vector<1x8x8xi1>
    %81 = vector.broadcast %80 : vector<1x8x8xi1> to vector<4x8x8xi1>
    %82 = vector.broadcast %cst_14 : f32 to vector<4x8x8xf32>
    %83 = arith.select %81, %79, %82 : vector<4x8x8xi1>, vector<4x8x8xf32>
    %cst_15 = arith.constant dense<0xFF800000> : vector<4x8xf32>
    %84 = vector.multi_reduction <maximumf>, %83, %cst_15 [2] : vector<4x8x8xf32> to vector<4x8xf32>
    %85 = vector.shape_cast %84 : vector<4x8xf32> to vector<4x8x1xf32>
    %86 = vector.broadcast %85 : vector<4x8x1xf32> to vector<4x8x8xf32>
    %87 = arith.subf %83, %86 : vector<4x8x8xf32>
    %88 = math.exp %87 : vector<4x8x8xf32>
    %cst_16 = arith.constant dense<0.000000e+00> : vector<4x8xf32>
    %89 = vector.multi_reduction <add>, %88, %cst_16 [2] : vector<4x8x8xf32> to vector<4x8xf32>
    %90 = vector.shape_cast %89 : vector<4x8xf32> to vector<4x8x1xf32>
    %91 = tpu.reciprocal %90 {approx = true} : vector<4x8x1xf32> -> vector<4x8x1xf32>
    %92 = vector.broadcast %91 : vector<4x8x1xf32> to vector<4x8x8xf32>
    %93 = arith.mulf %88, %92 : vector<4x8x8xf32>
    %94 = arith.truncf %93 : vector<4x8x8xf32> to vector<4x8x8xbf16>
    %95 = arith.truncf %76 : vector<4x8x8xf32> to vector<4x8x8xbf16>
    "tpu.trace_start"() <{level = 10 : i32, message = "hts,hsd->htd"}> : () -> ()
    %cst_17 = arith.constant dense<0.000000e+00> : vector<4x8x8xf32>
    %96 = tpu.matmul %94, %95, %cst_17 {dimension_numbers = #tpu.dot_dimension_numbers<[2], [1], [1], [2], [0, 0, 0, 1, 1, 2], [0], [0]>} : vector<4x8x8xbf16>, vector<4x8x8xbf16>, vector<4x8x8xf32> -> vector<4x8x8xf32>
    "tpu.trace_stop"() : () -> ()
    %97 = arith.truncf %96 : vector<4x8x8xf32> to vector<4x8x8xbf16>
    %c0_18 = arith.constant 0 : index
    %c0_19 = arith.constant 0 : index
    %c0_20 = arith.constant 0 : index
    %98 = vector.load %arg6[%c0_18, %c0_19, %c0_20] : memref<4x8x32xbf16, #tpu.memory_space<vmem>>, vector<4x8x32xbf16>
    "tpu.trace_start"() <{level = 10 : i32, message = "htd,hde->hte"}> : () -> ()
    %cst_21 = arith.constant dense<0.000000e+00> : vector<4x8x32xf32>
    %99 = tpu.matmul %97, %98, %cst_21 {dimension_numbers = #tpu.dot_dimension_numbers<[2], [1], [1], [2], [0, 0, 0, 1, 1, 2], [0], [0]>} : vector<4x8x8xbf16>, vector<4x8x32xbf16>, vector<4x8x32xf32> -> vector<4x8x32xf32>
    "tpu.trace_stop"() : () -> ()
    %cst_22 = arith.constant dense<0.000000e+00> : vector<8x32xf32>
    %100 = vector.multi_reduction <add>, %99, %cst_22 [0] : vector<4x8x32xf32> to vector<8x32xf32>
    %101 = vector.extract_strided_slice %18 {offsets = [8, 0], sizes = [8, 32], strides = [1, 1]} : vector<16x32xf32> to vector<8x32xf32>
    %102 = vector.extract_strided_slice %19 {offsets = [8, 0], sizes = [8, 16], strides = [1, 1]} : vector<16x16xf32> to vector<8x16xf32>
    %103 = vector.extract_strided_slice %20 {offsets = [8, 0], sizes = [8, 16], strides = [1, 1]} : vector<16x16xf32> to vector<8x16xf32>
    %104 = vector.extract_strided_slice %101 {offsets = [0, 0], sizes = [8, 8], strides = [1, 1]} : vector<8x32xf32> to vector<8x8xf32>
    %105 = vector.extract_strided_slice %101 {offsets = [0, 8], sizes = [8, 8], strides = [1, 1]} : vector<8x32xf32> to vector<8x8xf32>
    %106 = vector.extract_strided_slice %101 {offsets = [0, 16], sizes = [8, 8], strides = [1, 1]} : vector<8x32xf32> to vector<8x8xf32>
    %107 = vector.extract_strided_slice %101 {offsets = [0, 24], sizes = [8, 8], strides = [1, 1]} : vector<8x32xf32> to vector<8x8xf32>
    %108 = vector.shape_cast %104 : vector<8x8xf32> to vector<1x8x8xf32>
    %109 = vector.shape_cast %105 : vector<8x8xf32> to vector<1x8x8xf32>
    %110 = vector.shape_cast %106 : vector<8x8xf32> to vector<1x8x8xf32>
    %111 = vector.shape_cast %107 : vector<8x8xf32> to vector<1x8x8xf32>
    %112 = tpu.concatenate %108, %109, %110, %111 in 0 : vector<1x8x8xf32>, vector<1x8x8xf32>, vector<1x8x8xf32>, vector<1x8x8xf32> -> vector<4x8x8xf32>
    %113 = vector.extract_strided_slice %112 {offsets = [0, 0, 4], sizes = [4, 8, 4], strides = [1, 1, 1]} : vector<4x8x8xf32> to vector<4x8x4xf32>
    %114 = vector.extract_strided_slice %112 {offsets = [0, 0, 0], sizes = [4, 8, 4], strides = [1, 1, 1]} : vector<4x8x8xf32> to vector<4x8x4xf32>
    %115 = tpu.concatenate %113, %114 in 2 : vector<4x8x4xf32>, vector<4x8x4xf32> -> vector<4x8x8xf32>
    %116 = vector.shape_cast %21 : vector<8x8xf32> to vector<1x8x8xf32>
    %117 = vector.broadcast %116 : vector<1x8x8xf32> to vector<4x8x8xf32>
    %118 = arith.mulf %112, %117 : vector<4x8x8xf32>
    %119 = vector.shape_cast %22 : vector<8x8xf32> to vector<1x8x8xf32>
    %120 = vector.broadcast %119 : vector<1x8x8xf32> to vector<4x8x8xf32>
    %121 = arith.mulf %115, %120 : vector<4x8x8xf32>
    %122 = arith.addf %118, %121 : vector<4x8x8xf32>
    %123 = vector.extract_strided_slice %102 {offsets = [0, 0], sizes = [8, 8], strides = [1, 1]} : vector<8x16xf32> to vector<8x8xf32>
    %124 = vector.extract_strided_slice %102 {offsets = [0, 8], sizes = [8, 8], strides = [1, 1]} : vector<8x16xf32> to vector<8x8xf32>
    %125 = vector.shape_cast %123 : vector<8x8xf32> to vector<1x8x8xf32>
    %126 = vector.shape_cast %124 : vector<8x8xf32> to vector<1x8x8xf32>
    %127 = tpu.concatenate %125, %126 in 0 : vector<1x8x8xf32>, vector<1x8x8xf32> -> vector<2x8x8xf32>
    %128 = vector.extract_strided_slice %127 {offsets = [0, 0, 4], sizes = [2, 8, 4], strides = [1, 1, 1]} : vector<2x8x8xf32> to vector<2x8x4xf32>
    %129 = vector.extract_strided_slice %127 {offsets = [0, 0, 0], sizes = [2, 8, 4], strides = [1, 1, 1]} : vector<2x8x8xf32> to vector<2x8x4xf32>
    %130 = tpu.concatenate %128, %129 in 2 : vector<2x8x4xf32>, vector<2x8x4xf32> -> vector<2x8x8xf32>
    %131 = vector.shape_cast %21 : vector<8x8xf32> to vector<1x8x8xf32>
    %132 = vector.broadcast %131 : vector<1x8x8xf32> to vector<2x8x8xf32>
    %133 = arith.mulf %127, %132 : vector<2x8x8xf32>
    %134 = vector.shape_cast %22 : vector<8x8xf32> to vector<1x8x8xf32>
    %135 = vector.broadcast %134 : vector<1x8x8xf32> to vector<2x8x8xf32>
    %136 = arith.mulf %130, %135 : vector<2x8x8xf32>
    %137 = arith.addf %133, %136 : vector<2x8x8xf32>
    %138 = vector.extract_strided_slice %103 {offsets = [0, 0], sizes = [8, 8], strides = [1, 1]} : vector<8x16xf32> to vector<8x8xf32>
    %139 = vector.extract_strided_slice %103 {offsets = [0, 8], sizes = [8, 8], strides = [1, 1]} : vector<8x16xf32> to vector<8x8xf32>
    %140 = vector.shape_cast %138 : vector<8x8xf32> to vector<1x8x8xf32>
    %141 = vector.shape_cast %139 : vector<8x8xf32> to vector<1x8x8xf32>
    %142 = tpu.concatenate %140, %141 in 0 : vector<1x8x8xf32>, vector<1x8x8xf32> -> vector<2x8x8xf32>
    %143 = vector.shape_cast %137 : vector<2x8x8xf32> to vector<2x1x8x8xf32>
    %144 = vector.shape_cast %143 : vector<2x1x8x8xf32> to vector<2x1x8x8xf32>
    %145 = vector.broadcast %144 : vector<2x1x8x8xf32> to vector<2x2x8x8xf32>
    %146 = vector.shape_cast %145 : vector<2x2x8x8xf32> to vector<4x8x8xf32>
    %147 = vector.shape_cast %142 : vector<2x8x8xf32> to vector<2x1x8x8xf32>
    %148 = vector.shape_cast %147 : vector<2x1x8x8xf32> to vector<2x1x8x8xf32>
    %149 = vector.broadcast %148 : vector<2x1x8x8xf32> to vector<2x2x8x8xf32>
    %150 = vector.shape_cast %149 : vector<2x2x8x8xf32> to vector<4x8x8xf32>
    %151 = arith.truncf %122 : vector<4x8x8xf32> to vector<4x8x8xbf16>
    %152 = arith.truncf %146 : vector<4x8x8xf32> to vector<4x8x8xbf16>
    "tpu.trace_start"() <{level = 10 : i32, message = "htd,hsd->hts"}> : () -> ()
    %cst_23 = arith.constant dense<0.000000e+00> : vector<4x8x8xf32>
    %153 = tpu.matmul %151, %152, %cst_23 {dimension_numbers = #tpu.dot_dimension_numbers<[2], [2], [1], [1], [0, 0, 0, 1, 1, 1], [0], [0]>} : vector<4x8x8xbf16>, vector<4x8x8xbf16>, vector<4x8x8xf32> -> vector<4x8x8xf32>
    %cst_24 = arith.constant -1.000000e+30 : f32
    "tpu.trace_stop"() : () -> ()
    %154 = vector.shape_cast %26 : vector<1x8x8xi1> to vector<1x8x8xi1>
    %155 = vector.broadcast %154 : vector<1x8x8xi1> to vector<4x8x8xi1>
    %156 = vector.broadcast %cst_24 : f32 to vector<4x8x8xf32>
    %157 = arith.select %155, %153, %156 : vector<4x8x8xi1>, vector<4x8x8xf32>
    %cst_25 = arith.constant dense<0xFF800000> : vector<4x8xf32>
    %158 = vector.multi_reduction <maximumf>, %157, %cst_25 [2] : vector<4x8x8xf32> to vector<4x8xf32>
    %159 = vector.shape_cast %158 : vector<4x8xf32> to vector<4x8x1xf32>
    %160 = vector.broadcast %159 : vector<4x8x1xf32> to vector<4x8x8xf32>
    %161 = arith.subf %157, %160 : vector<4x8x8xf32>
    %162 = math.exp %161 : vector<4x8x8xf32>
    %cst_26 = arith.constant dense<0.000000e+00> : vector<4x8xf32>
    %163 = vector.multi_reduction <add>, %162, %cst_26 [2] : vector<4x8x8xf32> to vector<4x8xf32>
    %164 = vector.shape_cast %163 : vector<4x8xf32> to vector<4x8x1xf32>
    %165 = tpu.reciprocal %164 {approx = true} : vector<4x8x1xf32> -> vector<4x8x1xf32>
    %166 = vector.broadcast %165 : vector<4x8x1xf32> to vector<4x8x8xf32>
    %167 = arith.mulf %162, %166 : vector<4x8x8xf32>
    %168 = arith.truncf %167 : vector<4x8x8xf32> to vector<4x8x8xbf16>
    %169 = arith.truncf %150 : vector<4x8x8xf32> to vector<4x8x8xbf16>
    "tpu.trace_start"() <{level = 10 : i32, message = "hts,hsd->htd"}> : () -> ()
    %cst_27 = arith.constant dense<0.000000e+00> : vector<4x8x8xf32>
    %170 = tpu.matmul %168, %169, %cst_27 {dimension_numbers = #tpu.dot_dimension_numbers<[2], [1], [1], [2], [0, 0, 0, 1, 1, 2], [0], [0]>} : vector<4x8x8xbf16>, vector<4x8x8xbf16>, vector<4x8x8xf32> -> vector<4x8x8xf32>
    "tpu.trace_stop"() : () -> ()
    %171 = arith.truncf %170 : vector<4x8x8xf32> to vector<4x8x8xbf16>
    %c0_28 = arith.constant 0 : index
    %c0_29 = arith.constant 0 : index
    %c0_30 = arith.constant 0 : index
    %172 = vector.load %arg6[%c0_28, %c0_29, %c0_30] : memref<4x8x32xbf16, #tpu.memory_space<vmem>>, vector<4x8x32xbf16>
    "tpu.trace_start"() <{level = 10 : i32, message = "htd,hde->hte"}> : () -> ()
    %cst_31 = arith.constant dense<0.000000e+00> : vector<4x8x32xf32>
    %173 = tpu.matmul %171, %172, %cst_31 {dimension_numbers = #tpu.dot_dimension_numbers<[2], [1], [1], [2], [0, 0, 0, 1, 1, 2], [0], [0]>} : vector<4x8x8xbf16>, vector<4x8x32xbf16>, vector<4x8x32xf32> -> vector<4x8x32xf32>
    "tpu.trace_stop"() : () -> ()
    %cst_32 = arith.constant dense<0.000000e+00> : vector<8x32xf32>
    %174 = vector.multi_reduction <add>, %173, %cst_32 [0] : vector<4x8x32xf32> to vector<8x32xf32>
    %175 = tpu.concatenate %100, %174 in 0 : vector<8x32xf32>, vector<8x32xf32> -> vector<16x32xf32>
    %176 = arith.addf %1, %175 : vector<16x32xf32>
    %177 = arith.mulf %176, %176 : vector<16x32xf32>
    %cst_33 = arith.constant dense<0.000000e+00> : vector<16xf32>
    %178 = vector.multi_reduction <add>, %177, %cst_33 [1] : vector<16x32xf32> to vector<16xf32>
    %179 = vector.shape_cast %178 : vector<16xf32> to vector<16x1xf32>
    %cst_34 = arith.constant 3.200000e+01 : f32
    %180 = vector.broadcast %cst_34 : f32 to vector<16x1xf32>
    %181 = arith.divf %179, %180 : vector<16x1xf32>
    %cst_35 = arith.constant 9.99999974E-6 : f32
    %182 = vector.broadcast %cst_35 : f32 to vector<16x1xf32>
    %183 = arith.addf %181, %182 : vector<16x1xf32>
    %184 = math.rsqrt %183 : vector<16x1xf32>
    %185 = vector.broadcast %184 : vector<16x1xf32> to vector<16x32xf32>
    %186 = arith.mulf %176, %185 : vector<16x32xf32>
    %c0_36 = arith.constant 0 : index
    %c0_37 = arith.constant 0 : index
    %187 = vector.load %arg7[%c0_36, %c0_37] : memref<1x32xf32, #tpu.memory_space<vmem>>, vector<1x32xf32>
    %188 = vector.broadcast %187 : vector<1x32xf32> to vector<16x32xf32>
    %189 = arith.mulf %186, %188 : vector<16x32xf32>
    %190 = arith.truncf %189 : vector<16x32xf32> to vector<16x32xbf16>
    %c0_38 = arith.constant 0 : index
    %c0_39 = arith.constant 0 : index
    %191 = vector.load %arg8[%c0_38, %c0_39] : memref<32x128xbf16, #tpu.memory_space<vmem>>, vector<32x128xbf16>
    %cst_40 = arith.constant dense<0.000000e+00> : vector<16x128xf32>
    %192 = tpu.matmul %190, %191, %cst_40 {dimension_numbers = #tpu.dot_dimension_numbers<[1], [0], [0], [1], [0, 0, 1, 1], [], []>} : vector<16x32xbf16>, vector<32x128xbf16>, vector<16x128xf32> -> vector<16x128xf32>
    %193 = vector.extract_strided_slice %192 {offsets = [0, 0], sizes = [16, 64], strides = [1, 1]} : vector<16x128xf32> to vector<16x64xf32>
    %194 = arith.negf %193 : vector<16x64xf32>
    %195 = math.exp %194 : vector<16x64xf32>
    %cst_41 = arith.constant 1.000000e+00 : f32
    %196 = vector.broadcast %cst_41 : f32 to vector<16x64xf32>
    %197 = arith.addf %196, %195 : vector<16x64xf32>
    %198 = arith.divf %196, %197 : vector<16x64xf32>
    %199 = arith.mulf %193, %198 : vector<16x64xf32>
    %200 = vector.extract_strided_slice %192 {offsets = [0, 64], sizes = [16, 64], strides = [1, 1]} : vector<16x128xf32> to vector<16x64xf32>
    %201 = arith.mulf %199, %200 : vector<16x64xf32>
    %202 = arith.truncf %201 : vector<16x64xf32> to vector<16x64xbf16>
    %c0_42 = arith.constant 0 : index
    %c0_43 = arith.constant 0 : index
    %203 = vector.load %arg9[%c0_42, %c0_43] : memref<64x32xbf16, #tpu.memory_space<vmem>>, vector<64x32xbf16>
    %cst_44 = arith.constant dense<0.000000e+00> : vector<16x32xf32>
    %204 = tpu.matmul %202, %203, %cst_44 {dimension_numbers = #tpu.dot_dimension_numbers<[1], [0], [0], [1], [0, 0, 1, 1], [], []>} : vector<16x64xbf16>, vector<64x32xbf16>, vector<16x32xf32> -> vector<16x32xf32>
    %205 = arith.addf %176, %204 : vector<16x32xf32>
    %206 = vector.shape_cast %205 : vector<16x32xf32> to vector<2x8x32xf32>
    %c0_45 = arith.constant 0 : index
    %c0_46 = arith.constant 0 : index
    %c0_47 = arith.constant 0 : index
    %207 = vector.load %arg10[%c0_45, %c0_46, %c0_47] : memref<2x8x32xf32, #tpu.memory_space<vmem>>, vector<2x8x32xf32>
    tpu.vector_store %arg10[%c0_45, %c0_46, %c0_47], %206 {strides = array<i32>} : memref<2x8x32xf32, #tpu.memory_space<vmem>>, vector<2x8x32xf32>,
    return
  }
  func.func @transform_0(%arg0: i32) -> (i32, i32, i32) {
    %c0_i32 = arith.constant 0 : i32
    %c0_i32_0 = arith.constant 0 : i32
    %c0_i32_1 = arith.constant 0 : i32
    return %arg0, %c0_i32, %c0_i32_0 : i32, i32, i32
  }
  func.func @transform_1(%arg0: i32) -> (i32, i32) {
    %c0_i32 = arith.constant 0 : i32
    %c0_i32_0 = arith.constant 0 : i32
    %c0_i32_1 = arith.constant 0 : i32
    return %c0_i32, %c0_i32_0 : i32, i32
  }
  func.func @transform_2(%arg0: i32) -> (i32, i32) {
    %c0_i32 = arith.constant 0 : i32
    %c0_i32_0 = arith.constant 0 : i32
    %c0_i32_1 = arith.constant 0 : i32
    return %c0_i32, %c0_i32_0 : i32, i32
  }
  func.func @transform_3(%arg0: i32) -> (i32, i32) {
    %c0_i32 = arith.constant 0 : i32
    %c0_i32_0 = arith.constant 0 : i32
    %c0_i32_1 = arith.constant 0 : i32
    return %c0_i32, %c0_i32_0 : i32, i32
  }
  func.func @transform_4(%arg0: i32) -> (i32, i32) {
    %c0_i32 = arith.constant 0 : i32
    %c0_i32_0 = arith.constant 0 : i32
    %c0_i32_1 = arith.constant 0 : i32
    return %c0_i32, %c0_i32_0 : i32, i32
  }
  func.func @transform_5(%arg0: i32) -> (i32, i32, i32) {
    %c0_i32 = arith.constant 0 : i32
    %c0_i32_0 = arith.constant 0 : i32
    %c0_i32_1 = arith.constant 0 : i32
    %c0_i32_2 = arith.constant 0 : i32
    return %c0_i32, %c0_i32_0, %c0_i32_1 : i32, i32, i32
  }
  func.func @transform_6(%arg0: i32) -> (i32, i32) {
    %c0_i32 = arith.constant 0 : i32
    %c0_i32_0 = arith.constant 0 : i32
    %c0_i32_1 = arith.constant 0 : i32
    return %c0_i32, %c0_i32_0 : i32, i32
  }
  func.func @transform_7(%arg0: i32) -> (i32, i32) {
    %c0_i32 = arith.constant 0 : i32
    %c0_i32_0 = arith.constant 0 : i32
    %c0_i32_1 = arith.constant 0 : i32
    return %c0_i32, %c0_i32_0 : i32, i32
  }
  func.func @transform_8(%arg0: i32) -> (i32, i32) {
    %c0_i32 = arith.constant 0 : i32
    %c0_i32_0 = arith.constant 0 : i32
    %c0_i32_1 = arith.constant 0 : i32
    return %c0_i32, %c0_i32_0 : i32, i32
  }
  func.func @transform_9(%arg0: i32) -> (i32, i32, i32) {
    %c0_i32 = arith.constant 0 : i32
    %c0_i32_0 = arith.constant 0 : i32
    %c0_i32_1 = arith.constant 0 : i32
    return %arg0, %c0_i32, %c0_i32_0 : i32, i32, i32
  }
}

</mosaic_0001>

<llo_original>
// kernel: cogvlm_decoder_layer.1
$region0: #{cogvlm_decoder_layer.1}
  #allocation0 [shape = 'u32[]', space=smem, size = 0x4, offset = 0x4, fixed_abs, tag = 'smem constant byte address 0x4 - core index']
  #allocation1 [shape = 'u32[144,128]{1,0:T(1,128)}', space=vmem, size = 0x12000, scoped, tag = 'internal scratch']
  %s0 = inlined_call_operand.vmem [shape: f32[2,8,32], index: 0, kind: input, shape index: {}]
  %s1 = inlined_call_operand.hbm [shape: f32[8,8], index: 1, kind: input, shape index: {}]
  %s2 = inlined_call_operand.hbm [shape: f32[8,8], index: 2, kind: input, shape index: {}]
  %s3 = inlined_call_operand.vmem [shape: f32[1,32], index: 3, kind: input, shape index: {}]
  %s4 = inlined_call_operand.vmem [shape: bf16[32,64], index: 4, kind: input, shape index: {}]
  %s5 = inlined_call_operand.vmem [shape: bf16[4,8,32], index: 5, kind: input, shape index: {}]
  %s6 = inlined_call_operand.vmem [shape: f32[1,32], index: 6, kind: input, shape index: {}]
  %s7 = inlined_call_operand.hbm [shape: bf16[32,128], index: 7, kind: input, shape index: {}]
  %s8 = inlined_call_operand.vmem [shape: bf16[64,32], index: 8, kind: input, shape index: {}]
  %s9 = inlined_call_operand.hbm [shape: f32[2,8,32], index: 9, kind: output, shape index: {}]
  %s10 = sld [smem:[#allocation0]]
  $region58: #{cogvlm_decoder_layer.1} parent=0
    _
  %s12 = ssub.s32 1, %s10
  %s13 = scalar_select 0, %s12, %s10
  $region1: #{cogvlm_decoder_layer.1} parent=0
    #allocation2 [shape = 'u8[4096]{0}', space=vmem, size = 0x1000, scoped, tag = 'input window, operand 1, single buffered']
    #allocation3 [shape = 's32[1]{0}', space=sflag, size = 0x4, scoped, tag = 'scoped memory for cogvlm_decoder_layer.1']
    #allocation4 [shape = 's32[1]{0}', space=sflag, size = 0x4, scoped, tag = 'scoped memory for cogvlm_decoder_layer.1']
    #allocation5 [shape = 'u8[4096]{0}', space=vmem, size = 0x1000, scoped, tag = 'input window, operand 2, single buffered']
    #allocation6 [shape = 's32[1]{0}', space=sflag, size = 0x4, scoped, tag = 'scoped memory for cogvlm_decoder_layer.1']
    #allocation7 [shape = 'u8[8192]{0}', space=vmem, size = 0x2000, scoped, tag = 'input window, operand 7, single buffered']
    #allocation8 [shape = 'u8[8192]{0}', space=vmem, size = 0x2000, scoped, tag = 'output window, operand 0, single buffered']
    %14 = vsyncpa [#allocation3], 0
    %15 = vsyncpa [#allocation6], 0
    %16 = vsyncpa [#allocation4], 0
    // Predicated region
    $region2: #{cogvlm_decoder_layer.1} parent=1 // pred_check
      _
    $region3: #{cogvlm_decoder_layer.1} parent=1 // pred_check_branch
      %18 = sbr.rel (0) target = $region5
    $region4: #{cogvlm_decoder_layer.1} parent=1 // pred_region
      _
    $region5: #{cogvlm_decoder_layer.1} parent=1 // pred_fallthru
      _
    // Predicated region
    $region6: #{cogvlm_decoder_layer.1} parent=1 // pred_check
      _
    $region7: #{cogvlm_decoder_layer.1} parent=1 // pred_check_branch
      %20 = sbr.rel (0) target = $region9
    $region8: #{cogvlm_decoder_layer.1} parent=1 // pred_region
      %s22 = ssub.s32 128, 128
      %23 = vsyncadd [#allocation3], %s22
      %s25 = sshll.u32 [#allocation2], 4
      %s26 = int_to_ptr.vmem [resolvable:$true] %s25
      %28 = dma.hbm_to_vmem [thread:$0]  %s1, 128, %s26, [#allocation3]
    $region9: #{cogvlm_decoder_layer.1} parent=1 // pred_fallthru
      _
    // Predicated region
    $region10: #{cogvlm_decoder_layer.1} parent=1 // pred_check
      _
    $region11: #{cogvlm_decoder_layer.1} parent=1 // pred_check_branch
      %30 = sbr.rel (0) target = $region13
    $region12: #{cogvlm_decoder_layer.1} parent=1 // pred_region
      %s32 = ssub.s32 128, 128
      %33 = vsyncadd [#allocation6], %s32
      %s35 = sshll.u32 [#allocation5], 4
      %s36 = int_to_ptr.vmem [resolvable:$true] %s35
      %38 = dma.hbm_to_vmem [thread:$0]  %s2, 128, %s36, [#allocation6]
    $region13: #{cogvlm_decoder_layer.1} parent=1 // pred_fallthru
      _
    // Predicated region
    $region14: #{cogvlm_decoder_layer.1} parent=1 // pred_check
      _
    $region15: #{cogvlm_decoder_layer.1} parent=1 // pred_check_branch
      %40 = sbr.rel (0) target = $region17
    $region16: #{cogvlm_decoder_layer.1} parent=1 // pred_region
      _
    $region17: #{cogvlm_decoder_layer.1} parent=1 // pred_fallthru
      _
    // Predicated region
    $region18: #{cogvlm_decoder_layer.1} parent=1 // pred_check
      _
    $region19: #{cogvlm_decoder_layer.1} parent=1 // pred_check_branch
      %42 = sbr.rel (0) target = $region21
    $region20: #{cogvlm_decoder_layer.1} parent=1 // pred_region
      _
    $region21: #{cogvlm_decoder_layer.1} parent=1 // pred_fallthru
      _
    // Predicated region
    $region22: #{cogvlm_decoder_layer.1} parent=1 // pred_check
      _
    $region23: #{cogvlm_decoder_layer.1} parent=1 // pred_check_branch
      %44 = sbr.rel (0) target = $region25
    $region24: #{cogvlm_decoder_layer.1} parent=1 // pred_region
      _
    $region25: #{cogvlm_decoder_layer.1} parent=1 // pred_fallthru
      _
    // Predicated region
    $region26: #{cogvlm_decoder_layer.1} parent=1 // pred_check
      _
    $region27: #{cogvlm_decoder_layer.1} parent=1 // pred_check_branch
      %46 = sbr.rel (0) target = $region29
    $region28: #{cogvlm_decoder_layer.1} parent=1 // pred_region
      _
    $region29: #{cogvlm_decoder_layer.1} parent=1 // pred_fallthru
      _
    // Predicated region
    $region30: #{cogvlm_decoder_layer.1} parent=1 // pred_check
      _
    $region31: #{cogvlm_decoder_layer.1} parent=1 // pred_check_branch
      %48 = sbr.rel (0) target = $region33
    $region32: #{cogvlm_decoder_layer.1} parent=1 // pred_region
      %s50 = ssub.s32 256, 256
      %51 = vsyncadd [#allocation6], %s50
      %s52 = sshll.u32 [#allocation7], 4
      %s53 = int_to_ptr.vmem [resolvable:$true] %s52
      %58 = dma.hbm_to_vmem [thread:$0]  %s7, 256, %s53, [#allocation6], 64, 64, 4
    $region33: #{cogvlm_decoder_layer.1} parent=1 // pred_fallthru
      _
    // Predicated region
    $region34: #{cogvlm_decoder_layer.1} parent=1 // pred_check
      _
    $region35: #{cogvlm_decoder_layer.1} parent=1 // pred_check_branch
      %60 = sbr.rel (0) target = $region37
    $region36: #{cogvlm_decoder_layer.1} parent=1 // pred_region
      _
    $region37: #{cogvlm_decoder_layer.1} parent=1 // pred_fallthru
      _
    // Predicated region
    $region38: #{cogvlm_decoder_layer.1} parent=1 // pred_check
      _
    $region39: #{cogvlm_decoder_layer.1} parent=1 // pred_check_branch
      %62 = sbr.rel (0) target = $region41
    $region40: #{cogvlm_decoder_layer.1} parent=1 // pred_region
      %63 = dma.done [#allocation3], 128
    $region41: #{cogvlm_decoder_layer.1} parent=1 // pred_fallthru
      _
    // Predicated region
    $region42: #{cogvlm_decoder_layer.1} parent=1 // pred_check
      _
    $region43: #{cogvlm_decoder_layer.1} parent=1 // pred_check_branch
      %65 = sbr.rel (0) target = $region45
    $region44: #{cogvlm_decoder_layer.1} parent=1 // pred_region
      %66 = dma.done [#allocation6], 128
    $region45: #{cogvlm_decoder_layer.1} parent=1 // pred_fallthru
      _
    // Predicated region
    $region46: #{cogvlm_decoder_layer.1} parent=1 // pred_check
      _
    $region47: #{cogvlm_decoder_layer.1} parent=1 // pred_check_branch
      %68 = sbr.rel (0) target = $region49
    $region48: #{cogvlm_decoder_layer.1} parent=1 // pred_region
      %69 = dma.done [#allocation6], 256
    $region49: #{cogvlm_decoder_layer.1} parent=1 // pred_fallthru
      _
    %v71 = vld [vmem:[%s0] sm:$0xff]
    %v72 = vld [vmem:[%s0 + $0x8] sm:$0xff]
    %v73 = vmul.f32 %v71, %v71
    %v74 = vmul.f32 %v72, %v72
    %vm75 = vcmask 261120
    %v76 = vsel %vm75, %v73, 0.0
    %77 = vadd.xlane.f32.xlu0 %v76
    %v78 = vpop.xlane.xlu0 %77
    %v79 = vsel %vm75, %v74, 0.0
    %80 = vadd.xlane.f32.xlu0 %v79
    %v81 = vpop.xlane.xlu0 %80
    %v82 = vrcp.pop 32.0
    %v83 = vmul.f32 %v78, %v82
    %v84 = vmul.f32 %v81, %v82
    %v85 = vadd.f32 %v83, 1e-05
    %v86 = vadd.f32 %v84, 1e-05
    %v87 = vrsqrt.pop %v85
    %v88 = vrsqrt.pop %v86
    %v89 = vmul.f32 %v71, %v87
    %v90 = vmul.f32 %v72, %v88
    %v91 = vld [vmem:[%s3] sm:$0x1]
    %v93 = vlaneseq
    %v94 = vshrl.u32 %v93, 7
    %v95 = vsub.s32 0, %v94
    %v96 = vrot.slane %v91, %v95
    %v98 = vmul.f32 %v89, %v96
    %v99 = vmul.f32 %v90, %v96
    %v100 = vpack.c.bf16 %v99, %v98
    %v101 = vld [vmem:[%s4] sm:$0xf]
    %v102 = vld [vmem:[%s4 + $0x4] sm:$0xf]
    %v103 = vld [vmem:[%s4 + $0x8] sm:$0xf]
    %v104 = vld [vmem:[%s4 + $0xc] sm:$0xf]
    %v109 = vunpack.c.l.b16 %v101
    %v110 = vunpack.c.l.b16 %v102
    %v111 = vunpack.c.l.b16 %v103
    %v112 = vunpack.c.l.b16 %v104
    %v113 = vpack.c.b16 %v110, %v109
    %v114 = vpack.c.b16 %v112, %v111
    %v118 = vsel %vm75, %v100, 0
    %120 = vmatprep.subr.bf16.mxu0 0
    %121 = vmatpush1.bf16.msra.mxu0 0
    %122 = vmatprep.subr.bf16.mxu0 0
    %123 = vmatpush1.bf16.msra.mxu0 0
    %124 = vmatprep.subr.bf16.mxu0 0
    %125 = vmatpush1.bf16.msra.mxu0 0
    %126 = vmatprep.subr.bf16.mxu0 0
    %127 = vmatpush1.bf16.msra.mxu0 0
    %128 = vmatprep.subr.bf16.mxu0 0
    %129 = vmatpush1.bf16.msra.mxu0 0
    %130 = vmatprep.subr.bf16.mxu0 0
    %131 = vmatpush1.bf16.msra.mxu0 0
    %132 = vmatprep.subr.bf16.mxu0 0
    %133 = vmatpush1.bf16.msra.mxu0 %v114
    %134 = vmatprep.subr.bf16.mxu0 0
    %135 = vmatpush1.bf16.msra.mxu0 %v113
    %136 = vmatprep.subr.bf16.mxu0 0
    %137 = vmatpush2.bf16.msra.mxu0 0
    %138 = vmatprep.subr.bf16.mxu0 0
    %139 = vmatpush2.bf16.msra.mxu0 0
    %140 = vmatprep.subr.bf16.mxu0 0
    %141 = vmatpush2.bf16.msra.mxu0 0
    %142 = vmatprep.subr.bf16.mxu0 0
    %143 = vmatpush2.bf16.msra.mxu0 0
    %144 = vmatprep.subr.bf16.mxu0 0
    %145 = vmatpush2.bf16.msra.mxu0 0
    %146 = vmatprep.subr.bf16.mxu0 0
    %147 = vmatpush2.bf16.msra.mxu0 0
    %148 = vmatprep.subr.bf16.mxu0 0
    %149 = vmatpush2.bf16.msra.mxu0 0
    %150 = vmatprep.subr.bf16.mxu0 0
    %151 = vmatpush2.bf16.msra.mxu0 0
    %152 = vmatprep.mubr.bf16.mxu0 0
    %153 = vmatmul.mubr.bf16.gmra.mxu0 %v118
    %v154 = vpop.f32.mrf.mxu0
    %v155 = vadd.f32 0.0, %v154
    %v156 = vpop.f32.mrf.mxu0
    %v157 = vpop.f32.mrf.mxu0
    %v158 = vadd.f32 0.0, %v157
    %v159 = vpop.f32.mrf.mxu0
    %160 = vdwg.mxu0
    %v161 = vld [vmem:[#allocation2] sm:$0xff]
    %v162 = vld [vmem:[#allocation5] sm:$0xff]
    %v163 = vlaneseq
    %v164 = vshrl.u32 %v163, 7
    %v165 = vlaneseq
    %v166 = vand.u32 %v165, 127
    %vm167 = vcmp.le.s32.totalorder %v166, %v164
    %169 = vrot.lane.b32.xlu0 %v155, 120
    %v170 = vpop.permute.xlu0 %169
    %172 = vrot.lane.b32.xlu0 %v155, 112
    %v173 = vpop.permute.xlu0 %172
    %175 = vrot.lane.b32.xlu0 %v155, 104
    %v176 = vpop.permute.xlu0 %175
    %178 = vrot.lane.b32.xlu0 %v155, 124
    %v179 = vpop.permute.xlu0 %178
    %180 = vrot.lane.b32.xlu0 %v170, 124
    %v181 = vpop.permute.xlu0 %180
    %182 = vrot.lane.b32.xlu0 %v173, 124
    %v183 = vpop.permute.xlu0 %182
    %184 = vrot.lane.b32.xlu0 %v176, 124
    %v185 = vpop.permute.xlu0 %184
    %190 = vrot.lane.b32.xlu0 %v155, 4
    %v191 = vpop.permute.xlu0 %190
    %192 = vrot.lane.b32.xlu0 %v170, 4
    %v193 = vpop.permute.xlu0 %192
    %194 = vrot.lane.b32.xlu0 %v173, 4
    %v195 = vpop.permute.xlu0 %194
    %196 = vrot.lane.b32.xlu0 %v176, 4
    %v197 = vpop.permute.xlu0 %196
    %vm202 = vcmask 31744
    %v203 = vsel %vm202, %v179, %v191
    %v204 = vsel %vm202, %v181, %v193
    %v205 = vsel %vm202, %v183, %v195
    %v206 = vsel %vm202, %v185, %v197
    %v207 = vmul.f32 %v155, %v161
    %v208 = vmul.f32 %v170, %v161
    %v209 = vmul.f32 %v173, %v161
    %v210 = vmul.f32 %v176, %v161
    %v211 = vmul.f32 %v203, %v162
    %v212 = vmul.f32 %v204, %v162
    %v213 = vmul.f32 %v205, %v162
    %v214 = vmul.f32 %v206, %v162
    %v215 = vadd.f32 %v207, %v211
    %v216 = vadd.f32 %v208, %v212
    %v217 = vadd.f32 %v209, %v213
    %v218 = vadd.f32 %v210, %v214
    %219 = vrot.lane.b32.xlu0 %v155, 92
    %v220 = vpop.permute.xlu0 %219
    %221 = vrot.lane.b32.xlu0 %v170, 92
    %v222 = vpop.permute.xlu0 %221
    %225 = vrot.lane.b32.xlu0 %v155, 100
    %v226 = vpop.permute.xlu0 %225
    %227 = vrot.lane.b32.xlu0 %v170, 100
    %v228 = vpop.permute.xlu0 %227
    %v231 = vsel %vm202, %v220, %v226
    %v232 = vsel %vm202, %v222, %v228
    %234 = vrot.lane.b32.xlu0 %v161, 32
    %v235 = vpop.permute.xlu0 %234
    %v237 = vmul.f32 %v155, %v235
    %v238 = vmul.f32 %v170, %v235
    %v239 = vmul.f32 %v231, %v162
    %v240 = vmul.f32 %v232, %v162
    %243 = vrot.lane.b32.xlu0 %v239, 32
    %v244 = vpop.permute.xlu0 %243
    %245 = vrot.lane.b32.xlu0 %v240, 32
    %v246 = vpop.permute.xlu0 %245
    %v249 = vadd.f32 %v237, %v244
    %v250 = vadd.f32 %v238, %v246
    %v251 = vpack.c.bf16 %v215, %v215
    %v252 = vpack.c.bf16 %v216, %v216
    %v253 = vpack.c.bf16 %v217, %v217
    %v254 = vpack.c.bf16 %v218, %v218
    %v255 = vpack.c.bf16 %v249, %v249
    %v256 = vpack.c.bf16 %v250, %v250
    %258 = vrot.lane.b32.xlu0 %v255, 96
    %v259 = vpop.permute.xlu0 %258
    %vm260 = vcmask 64512
    %v262 = vsel %vm260, %v251, 0
    %v265 = vsel %vm260, %v259, 0
    %267 = vmatprep.subr.bf16.mxu0 0
    %268 = vmatpush1.bf16.xpose.msra.mxu0 0
    %269 = vmatprep.subr.bf16.mxu0 0
    %270 = vmatpush1.bf16.xpose.msra.mxu0 0
    %271 = vmatprep.subr.bf16.mxu0 0
    %272 = vmatpush1.bf16.xpose.msra.mxu0 0
    %273 = vmatprep.subr.bf16.mxu0 0
    %274 = vmatpush1.bf16.xpose.msra.mxu0 0
    %275 = vmatprep.subr.bf16.mxu0 0
    %276 = vmatpush1.bf16.xpose.msra.mxu0 0
    %277 = vmatprep.subr.bf16.mxu0 0
    %278 = vmatpush1.bf16.xpose.msra.mxu0 0
    %279 = vmatprep.subr.bf16.mxu0 0
    %280 = vmatpush1.bf16.xpose.msra.mxu0 0
    %281 = vmatprep.subr.bf16.mxu0 0
    %282 = vmatpush1.bf16.xpose.msra.mxu0 %v265
    %283 = vmatprep.subr.bf16.mxu0 0
    %284 = vmatpush2.bf16.xpose.msra.mxu0 0
    %285 = vmatprep.subr.bf16.mxu0 0
    %286 = vmatpush2.bf16.xpose.msra.mxu0 0
    %287 = vmatprep.subr.bf16.mxu0 0
    %288 = vmatpush2.bf16.xpose.msra.mxu0 0
    %289 = vmatprep.subr.bf16.mxu0 0
    %290 = vmatpush2.bf16.xpose.msra.mxu0 0
    %291 = vmatprep.subr.bf16.mxu0 0
    %292 = vmatpush2.bf16.xpose.msra.mxu0 0
    %293 = vmatprep.subr.bf16.mxu0 0
    %294 = vmatpush2.bf16.xpose.msra.mxu0 0
    %295 = vmatprep.subr.bf16.mxu0 0
    %296 = vmatpush2.bf16.xpose.msra.mxu0 0
    %297 = vmatprep.subr.bf16.mxu0 0
    %298 = vmatpush2.bf16.xpose.msra.mxu0 0
    %299 = vmatprep.mubr.bf16.mxu0 0
    %300 = vmatmul.mubr.bf16.gmra.mxu0 %v262
    %v301 = vpop.f32.mrf.mxu0
    %v302 = vadd.f32 0.0, %v301
    %v303 = vpop.f32.mrf.mxu0
    %v304 = vpop.f32.mrf.mxu0
    %v305 = vpop.f32.mrf.mxu0
    %306 = vdwg.mxu0
    %v308 = vsel %vm260, %v252, 0
    %310 = vmatprep.subr.bf16.mxu0 0
    %311 = vmatpush1.bf16.xpose.msra.mxu0 0
    %312 = vmatprep.subr.bf16.mxu0 0
    %313 = vmatpush1.bf16.xpose.msra.mxu0 0
    %314 = vmatprep.subr.bf16.mxu0 0
    %315 = vmatpush1.bf16.xpose.msra.mxu0 0
    %316 = vmatprep.subr.bf16.mxu0 0
    %317 = vmatpush1.bf16.xpose.msra.mxu0 0
    %318 = vmatprep.subr.bf16.mxu0 0
    %319 = vmatpush1.bf16.xpose.msra.mxu0 0
    %320 = vmatprep.subr.bf16.mxu0 0
    %321 = vmatpush1.bf16.xpose.msra.mxu0 0
    %322 = vmatprep.subr.bf16.mxu0 0
    %323 = vmatpush1.bf16.xpose.msra.mxu0 0
    %324 = vmatprep.subr.bf16.mxu0 0
    %325 = vmatpush1.bf16.xpose.msra.mxu0 %v265
    %326 = vmatprep.subr.bf16.mxu0 0
    %327 = vmatpush2.bf16.xpose.msra.mxu0 0
    %328 = vmatprep.subr.bf16.mxu0 0
    %329 = vmatpush2.bf16.xpose.msra.mxu0 0
    %330 = vmatprep.subr.bf16.mxu0 0
    %331 = vmatpush2.bf16.xpose.msra.mxu0 0
    %332 = vmatprep.subr.bf16.mxu0 0
    %333 = vmatpush2.bf16.xpose.msra.mxu0 0
    %334 = vmatprep.subr.bf16.mxu0 0
    %335 = vmatpush2.bf16.xpose.msra.mxu0 0
    %336 = vmatprep.subr.bf16.mxu0 0
    %337 = vmatpush2.bf16.xpose.msra.mxu0 0
    %338 = vmatprep.subr.bf16.mxu0 0
    %339 = vmatpush2.bf16.xpose.msra.mxu0 0
    %340 = vmatprep.subr.bf16.mxu0 0
    %341 = vmatpush2.bf16.xpose.msra.mxu0 0
    %342 = vmatprep.mubr.bf16.mxu0 0
    %343 = vmatmul.mubr.bf16.gmra.mxu0 %v308
    %v344 = vpop.f32.mrf.mxu0
    %v345 = vadd.f32 0.0, %v344
    %v346 = vpop.f32.mrf.mxu0
    %v347 = vpop.f32.mrf.mxu0
    %v348 = vpop.f32.mrf.mxu0
    %349 = vdwg.mxu0
    %351 = vrot.lane.b32.xlu0 %v256, 96
    %v352 = vpop.permute.xlu0 %351
    %v354 = vsel %vm260, %v253, 0
    %v357 = vsel %vm260, %v352, 0
    %359 = vmatprep.subr.bf16.mxu0 0
    %360 = vmatpush1.bf16.xpose.msra.mxu0 0
    %361 = vmatprep.subr.bf16.mxu0 0
    %362 = vmatpush1.bf16.xpose.msra.mxu0 0
    %363 = vmatprep.subr.bf16.mxu0 0
    %364 = vmatpush1.bf16.xpose.msra.mxu0 0
    %365 = vmatprep.subr.bf16.mxu0 0
    %366 = vmatpush1.bf16.xpose.msra.mxu0 0
    %367 = vmatprep.subr.bf16.mxu0 0
    %368 = vmatpush1.bf16.xpose.msra.mxu0 0
    %369 = vmatprep.subr.bf16.mxu0 0
    %370 = vmatpush1.bf16.xpose.msra.mxu0 0
    %371 = vmatprep.subr.bf16.mxu0 0
    %372 = vmatpush1.bf16.xpose.msra.mxu0 0
    %373 = vmatprep.subr.bf16.mxu0 0
    %374 = vmatpush1.bf16.xpose.msra.mxu0 %v357
    %375 = vmatprep.subr.bf16.mxu0 0
    %376 = vmatpush2.bf16.xpose.msra.mxu0 0
    %377 = vmatprep.subr.bf16.mxu0 0
    %378 = vmatpush2.bf16.xpose.msra.mxu0 0
    %379 = vmatprep.subr.bf16.mxu0 0
    %380 = vmatpush2.bf16.xpose.msra.mxu0 0
    %381 = vmatprep.subr.bf16.mxu0 0
    %382 = vmatpush2.bf16.xpose.msra.mxu0 0
    %383 = vmatprep.subr.bf16.mxu0 0
    %384 = vmatpush2.bf16.xpose.msra.mxu0 0
    %385 = vmatprep.subr.bf16.mxu0 0
    %386 = vmatpush2.bf16.xpose.msra.mxu0 0
    %387 = vmatprep.subr.bf16.mxu0 0
    %388 = vmatpush2.bf16.xpose.msra.mxu0 0
    %389 = vmatprep.subr.bf16.mxu0 0
    %390 = vmatpush2.bf16.xpose.msra.mxu0 0
    %391 = vmatprep.mubr.bf16.mxu0 0
    %392 = vmatmul.mubr.bf16.gmra.mxu0 %v354
    %v393 = vpop.f32.mrf.mxu0
    %v394 = vadd.f32 0.0, %v393
    %v395 = vpop.f32.mrf.mxu0
    %v396 = vpop.f32.mrf.mxu0
    %v397 = vpop.f32.mrf.mxu0
    %398 = vdwg.mxu0
    %v400 = vsel %vm260, %v254, 0
    %402 = vmatprep.subr.bf16.mxu0 0
    %403 = vmatpush1.bf16.xpose.msra.mxu0 0
    %404 = vmatprep.subr.bf16.mxu0 0
    %405 = vmatpush1.bf16.xpose.msra.mxu0 0
    %406 = vmatprep.subr.bf16.mxu0 0
    %407 = vmatpush1.bf16.xpose.msra.mxu0 0
    %408 = vmatprep.subr.bf16.mxu0 0
    %409 = vmatpush1.bf16.xpose.msra.mxu0 0
    %410 = vmatprep.subr.bf16.mxu0 0
    %411 = vmatpush1.bf16.xpose.msra.mxu0 0
    %412 = vmatprep.subr.bf16.mxu0 0
    %413 = vmatpush1.bf16.xpose.msra.mxu0 0
    %414 = vmatprep.subr.bf16.mxu0 0
    %415 = vmatpush1.bf16.xpose.msra.mxu0 0
    %416 = vmatprep.subr.bf16.mxu0 0
    %417 = vmatpush1.bf16.xpose.msra.mxu0 %v357
    %418 = vmatprep.subr.bf16.mxu0 0
    %419 = vmatpush2.bf16.xpose.msra.mxu0 0
    %420 = vmatprep.subr.bf16.mxu0 0
    %421 = vmatpush2.bf16.xpose.msra.mxu0 0
    %422 = vmatprep.subr.bf16.mxu0 0
    %423 = vmatpush2.bf16.xpose.msra.mxu0 0
    %424 = vmatprep.subr.bf16.mxu0 0
    %425 = vmatpush2.bf16.xpose.msra.mxu0 0
    %426 = vmatprep.subr.bf16.mxu0 0
    %427 = vmatpush2.bf16.xpose.msra.mxu0 0
    %428 = vmatprep.subr.bf16.mxu0 0
    %429 = vmatpush2.bf16.xpose.msra.mxu0 0
    %430 = vmatprep.subr.bf16.mxu0 0
    %431 = vmatpush2.bf16.xpose.msra.mxu0 0
    %432 = vmatprep.subr.bf16.mxu0 0
    %433 = vmatpush2.bf16.xpose.msra.mxu0 0
    %434 = vmatprep.mubr.bf16.mxu0 0
    %435 = vmatmul.mubr.bf16.gmra.mxu0 %v400
    %v436 = vpop.f32.mrf.mxu0
    %v437 = vadd.f32 0.0, %v436
    %v438 = vpop.f32.mrf.mxu0
    %v439 = vpop.f32.mrf.mxu0
    %v440 = vpop.f32.mrf.mxu0
    %441 = vdwg.mxu0
    %v442 = vsel %vm167, 1, 0
    %vm443 = vcmp.eq.s32.totalorder %v442, 1
    %v444 = vsel %vm443, %v302, -1e+30
    %v445 = vsel %vm443, %v345, -1e+30
    %v446 = vsel %vm443, %v394, -1e+30
    %v447 = vsel %vm443, %v437, -1e+30
    %v448 = vsel %vm260, %v444, -inf
    %449 = vmax.xlane.f32.xlu0 %v448
    %v450 = vpop.xlane.xlu0 %449
    %v451 = vsel %vm260, %v445, -inf
    %452 = vmax.xlane.f32.xlu0 %v451
    %v453 = vpop.xlane.xlu0 %452
    %v454 = vsel %vm260, %v446, -inf
    %455 = vmax.xlane.f32.xlu0 %v454
    %v456 = vpop.xlane.xlu0 %455
    %v457 = vsel %vm260, %v447, -inf
    %458 = vmax.xlane.f32.xlu0 %v457
    %v459 = vpop.xlane.xlu0 %458
    %v460 = vsub.f32 %v444, %v450
    %v461 = vsub.f32 %v445, %v453
    %v462 = vsub.f32 %v446, %v456
    %v463 = vsub.f32 %v447, %v459
    %v464 = vmul.f32 %v460, 1.442695
    %v465 = vpow.pop %v464
    %v466 = vmul.f32 %v461, 1.442695
    %v467 = vpow.pop %v466
    %v468 = vmul.f32 %v462, 1.442695
    %v469 = vpow.pop %v468
    %v470 = vmul.f32 %v463, 1.442695
    %v471 = vpow.pop %v470
    %v472 = vsel %vm260, %v465, 0.0
    %473 = vadd.xlane.f32.xlu0 %v472
    %v474 = vpop.xlane.xlu0 %473
    %v475 = vsel %vm260, %v467, 0.0
    %476 = vadd.xlane.f32.xlu0 %v475
    %v477 = vpop.xlane.xlu0 %476
    %v478 = vsel %vm260, %v469, 0.0
    %479 = vadd.xlane.f32.xlu0 %v478
    %v480 = vpop.xlane.xlu0 %479
    %v481 = vsel %vm260, %v471, 0.0
    %482 = vadd.xlane.f32.xlu0 %v481
    %v483 = vpop.xlane.xlu0 %482
    %v484 = vrcp.pop %v474
    %v485 = vrcp.pop %v477
    %v486 = vrcp.pop %v480
    %v487 = vrcp.pop %v483
    %v488 = vmul.f32 %v465, %v484
    %v489 = vmul.f32 %v467, %v485
    %v490 = vmul.f32 %v469, %v486
    %v491 = vmul.f32 %v471, %v487
    %v492 = vpack.c.bf16 %v488, %v488
    %v493 = vpack.c.bf16 %v489, %v489
    %v494 = vpack.c.bf16 %v490, %v490
    %v495 = vpack.c.bf16 %v491, %v491
    %v496 = vpack.c.bf16 %v155, %v155
    %v497 = vpack.c.bf16 %v170, %v170
    %499 = vrot.lane.b32.xlu0 %v496, 80
    %v500 = vpop.permute.xlu0 %499
    %v502 = vsel %vm260, %v492, 0
    %vm504 = vcmask 1043456
    %v506 = vsel %vm504, %v500, 0
    %508 = vmatprep.subr.bf16.mxu0 0
    %509 = vmatpush1.bf16.msra.mxu0 0
    %510 = vmatprep.subr.bf16.mxu0 0
    %511 = vmatpush1.bf16.msra.mxu0 0
    %512 = vmatprep.subr.bf16.mxu0 0
    %513 = vmatpush1.bf16.msra.mxu0 0
    %514 = vmatprep.subr.bf16.mxu0 0
    %515 = vmatpush1.bf16.msra.mxu0 0
    %516 = vmatprep.subr.bf16.mxu0 0
    %517 = vmatpush1.bf16.msra.mxu0 0
    %518 = vmatprep.subr.bf16.mxu0 0
    %519 = vmatpush1.bf16.msra.mxu0 0
    %520 = vmatprep.subr.bf16.mxu0 0
    %521 = vmatpush1.bf16.msra.mxu0 0
    %522 = vmatprep.subr.bf16.mxu0 0
    %523 = vmatpush1.bf16.msra.mxu0 %v506
    %524 = vmatprep.subr.bf16.mxu0 0
    %525 = vmatpush2.bf16.msra.mxu0 0
    %526 = vmatprep.subr.bf16.mxu0 0
    %527 = vmatpush2.bf16.msra.mxu0 0
    %528 = vmatprep.subr.bf16.mxu0 0
    %529 = vmatpush2.bf16.msra.mxu0 0
    %530 = vmatprep.subr.bf16.mxu0 0
    %531 = vmatpush2.bf16.msra.mxu0 0
    %532 = vmatprep.subr.bf16.mxu0 0
    %533 = vmatpush2.bf16.msra.mxu0 0
    %534 = vmatprep.subr.bf16.mxu0 0
    %535 = vmatpush2.bf16.msra.mxu0 0
    %536 = vmatprep.subr.bf16.mxu0 0
    %537 = vmatpush2.bf16.msra.mxu0 0
    %538 = vmatprep.subr.bf16.mxu0 0
    %539 = vmatpush2.bf16.msra.mxu0 0
    %540 = vmatprep.mubr.bf16.mxu0 0
    %541 = vmatmul.mubr.bf16.gmra.mxu0 %v502
    %v542 = vpop.f32.mrf.mxu0
    %v543 = vadd.f32 0.0, %v542
    %v544 = vpop.f32.mrf.mxu0
    %v545 = vpop.f32.mrf.mxu0
    %v546 = vpop.f32.mrf.mxu0
    %547 = vdwg.mxu0
    %v549 = vsel %vm260, %v493, 0
    %551 = vmatprep.subr.bf16.mxu0 0
    %552 = vmatpush1.bf16.msra.mxu0 0
    %553 = vmatprep.subr.bf16.mxu0 0
    %554 = vmatpush1.bf16.msra.mxu0 0
    %555 = vmatprep.subr.bf16.mxu0 0
    %556 = vmatpush1.bf16.msra.mxu0 0
    %557 = vmatprep.subr.bf16.mxu0 0
    %558 = vmatpush1.bf16.msra.mxu0 0
    %559 = vmatprep.subr.bf16.mxu0 0
    %560 = vmatpush1.bf16.msra.mxu0 0
    %561 = vmatprep.subr.bf16.mxu0 0
    %562 = vmatpush1.bf16.msra.mxu0 0
    %563 = vmatprep.subr.bf16.mxu0 0
    %564 = vmatpush1.bf16.msra.mxu0 0
    %565 = vmatprep.subr.bf16.mxu0 0
    %566 = vmatpush1.bf16.msra.mxu0 %v506
    %567 = vmatprep.subr.bf16.mxu0 0
    %568 = vmatpush2.bf16.msra.mxu0 0
    %569 = vmatprep.subr.bf16.mxu0 0
    %570 = vmatpush2.bf16.msra.mxu0 0
    %571 = vmatprep.subr.bf16.mxu0 0
    %572 = vmatpush2.bf16.msra.mxu0 0
    %573 = vmatprep.subr.bf16.mxu0 0
    %574 = vmatpush2.bf16.msra.mxu0 0
    %575 = vmatprep.subr.bf16.mxu0 0
    %576 = vmatpush2.bf16.msra.mxu0 0
    %577 = vmatprep.subr.bf16.mxu0 0
    %578 = vmatpush2.bf16.msra.mxu0 0
    %579 = vmatprep.subr.bf16.mxu0 0
    %580 = vmatpush2.bf16.msra.mxu0 0
    %581 = vmatprep.subr.bf16.mxu0 0
    %582 = vmatpush2.bf16.msra.mxu0 0
    %583 = vmatprep.mubr.bf16.mxu0 0
    %584 = vmatmul.mubr.bf16.gmra.mxu0 %v549
    %v585 = vpop.f32.mrf.mxu0
    %v586 = vadd.f32 0.0, %v585
    %v587 = vpop.f32.mrf.mxu0
    %v588 = vpop.f32.mrf.mxu0
    %v589 = vpop.f32.mrf.mxu0
    %590 = vdwg.mxu0
    %592 = vrot.lane.b32.xlu0 %v497, 80
    %v593 = vpop.permute.xlu0 %592
    %v595 = vsel %vm260, %v494, 0
    %v598 = vsel %vm504, %v593, 0
    %600 = vmatprep.subr.bf16.mxu0 0
    %601 = vmatpush1.bf16.msra.mxu0 0
    %602 = vmatprep.subr.bf16.mxu0 0
    %603 = vmatpush1.bf16.msra.mxu0 0
    %604 = vmatprep.subr.bf16.mxu0 0
    %605 = vmatpush1.bf16.msra.mxu0 0
    %606 = vmatprep.subr.bf16.mxu0 0
    %607 = vmatpush1.bf16.msra.mxu0 0
    %608 = vmatprep.subr.bf16.mxu0 0
    %609 = vmatpush1.bf16.msra.mxu0 0
    %610 = vmatprep.subr.bf16.mxu0 0
    %611 = vmatpush1.bf16.msra.mxu0 0
    %612 = vmatprep.subr.bf16.mxu0 0
    %613 = vmatpush1.bf16.msra.mxu0 0
    %614 = vmatprep.subr.bf16.mxu0 0
    %615 = vmatpush1.bf16.msra.mxu0 %v598
    %616 = vmatprep.subr.bf16.mxu0 0
    %617 = vmatpush2.bf16.msra.mxu0 0
    %618 = vmatprep.subr.bf16.mxu0 0
    %619 = vmatpush2.bf16.msra.mxu0 0
    %620 = vmatprep.subr.bf16.mxu0 0
    %621 = vmatpush2.bf16.msra.mxu0 0
    %622 = vmatprep.subr.bf16.mxu0 0
    %623 = vmatpush2.bf16.msra.mxu0 0
    %624 = vmatprep.subr.bf16.mxu0 0
    %625 = vmatpush2.bf16.msra.mxu0 0
    %626 = vmatprep.subr.bf16.mxu0 0
    %627 = vmatpush2.bf16.msra.mxu0 0
    %628 = vmatprep.subr.bf16.mxu0 0
    %629 = vmatpush2.bf16.msra.mxu0 0
    %630 = vmatprep.subr.bf16.mxu0 0
    %631 = vmatpush2.bf16.msra.mxu0 0
    %632 = vmatprep.mubr.bf16.mxu0 0
    %633 = vmatmul.mubr.bf16.gmra.mxu0 %v595
    %v634 = vpop.f32.mrf.mxu0
    %v635 = vadd.f32 0.0, %v634
    %v636 = vpop.f32.mrf.mxu0
    %v637 = vpop.f32.mrf.mxu0
    %v638 = vpop.f32.mrf.mxu0
    %639 = vdwg.mxu0
    %v641 = vsel %vm260, %v495, 0
    %643 = vmatprep.subr.bf16.mxu0 0
    %644 = vmatpush1.bf16.msra.mxu0 0
    %645 = vmatprep.subr.bf16.mxu0 0
    %646 = vmatpush1.bf16.msra.mxu0 0
    %647 = vmatprep.subr.bf16.mxu0 0
    %648 = vmatpush1.bf16.msra.mxu0 0
    %649 = vmatprep.subr.bf16.mxu0 0
    %650 = vmatpush1.bf16.msra.mxu0 0
    %651 = vmatprep.subr.bf16.mxu0 0
    %652 = vmatpush1.bf16.msra.mxu0 0
    %653 = vmatprep.subr.bf16.mxu0 0
    %654 = vmatpush1.bf16.msra.mxu0 0
    %655 = vmatprep.subr.bf16.mxu0 0
    %656 = vmatpush1.bf16.msra.mxu0 0
    %657 = vmatprep.subr.bf16.mxu0 0
    %658 = vmatpush1.bf16.msra.mxu0 %v598
    %659 = vmatprep.subr.bf16.mxu0 0
    %660 = vmatpush2.bf16.msra.mxu0 0
    %661 = vmatprep.subr.bf16.mxu0 0
    %662 = vmatpush2.bf16.msra.mxu0 0
    %663 = vmatprep.subr.bf16.mxu0 0
    %664 = vmatpush2.bf16.msra.mxu0 0
    %665 = vmatprep.subr.bf16.mxu0 0
    %666 = vmatpush2.bf16.msra.mxu0 0
    %667 = vmatprep.subr.bf16.mxu0 0
    %668 = vmatpush2.bf16.msra.mxu0 0
    %669 = vmatprep.subr.bf16.mxu0 0
    %670 = vmatpush2.bf16.msra.mxu0 0
    %671 = vmatprep.subr.bf16.mxu0 0
    %672 = vmatpush2.bf16.msra.mxu0 0
    %673 = vmatprep.subr.bf16.mxu0 0
    %674 = vmatpush2.bf16.msra.mxu0 0
    %675 = vmatprep.mubr.bf16.mxu0 0
    %676 = vmatmul.mubr.bf16.gmra.mxu0 %v641
    %v677 = vpop.f32.mrf.mxu0
    %v678 = vadd.f32 0.0, %v677
    %v679 = vpop.f32.mrf.mxu0
    %v680 = vpop.f32.mrf.mxu0
    %v681 = vpop.f32.mrf.mxu0
    %682 = vdwg.mxu0
    %v683 = vpack.c.bf16 %v543, %v543
    %v684 = vpack.c.bf16 %v586, %v586
    %v685 = vpack.c.bf16 %v635, %v635
    %v686 = vpack.c.bf16 %v678, %v678
    %v687 = vld [vmem:[%s5] sm:$0xf]
    %v688 = vld [vmem:[%s5 + $0x4] sm:$0xf]
    %v689 = vld [vmem:[%s5 + $0x8] sm:$0xf]
    %v690 = vld [vmem:[%s5 + $0xc] sm:$0xf]
    %v692 = vsel %vm260, %v683, 0
    %v695 = vsel %vm504, %v687, 0
    %697 = vmatprep.subr.bf16.mxu0 0
    %698 = vmatpush1.bf16.msra.mxu0 0
    %699 = vmatprep.subr.bf16.mxu0 0
    %700 = vmatpush1.bf16.msra.mxu0 0
    %701 = vmatprep.subr.bf16.mxu0 0
    %702 = vmatpush1.bf16.msra.mxu0 0
    %703 = vmatprep.subr.bf16.mxu0 0
    %704 = vmatpush1.bf16.msra.mxu0 0
    %705 = vmatprep.subr.bf16.mxu0 0
    %706 = vmatpush1.bf16.msra.mxu0 0
    %707 = vmatprep.subr.bf16.mxu0 0
    %708 = vmatpush1.bf16.msra.mxu0 0
    %709 = vmatprep.subr.bf16.mxu0 0
    %710 = vmatpush1.bf16.msra.mxu0 0
    %711 = vmatprep.subr.bf16.mxu0 0
    %712 = vmatpush1.bf16.msra.mxu0 %v695
    %713 = vmatprep.subr.bf16.mxu0 0
    %714 = vmatpush2.bf16.msra.mxu0 0
    %715 = vmatprep.subr.bf16.mxu0 0
    %716 = vmatpush2.bf16.msra.mxu0 0
    %717 = vmatprep.subr.bf16.mxu0 0
    %718 = vmatpush2.bf16.msra.mxu0 0
    %719 = vmatprep.subr.bf16.mxu0 0
    %720 = vmatpush2.bf16.msra.mxu0 0
    %721 = vmatprep.subr.bf16.mxu0 0
    %722 = vmatpush2.bf16.msra.mxu0 0
    %723 = vmatprep.subr.bf16.mxu0 0
    %724 = vmatpush2.bf16.msra.mxu0 0
    %725 = vmatprep.subr.bf16.mxu0 0
    %726 = vmatpush2.bf16.msra.mxu0 0
    %727 = vmatprep.subr.bf16.mxu0 0
    %728 = vmatpush2.bf16.msra.mxu0 0
    %729 = vmatprep.mubr.bf16.mxu0 0
    %730 = vmatmul.mubr.bf16.gmra.mxu0 %v692
    %v731 = vpop.f32.mrf.mxu0
    %v732 = vadd.f32 0.0, %v731
    %v733 = vpop.f32.mrf.mxu0
    %v734 = vpop.f32.mrf.mxu0
    %v735 = vpop.f32.mrf.mxu0
    %736 = vdwg.mxu0
    %v738 = vsel %vm260, %v684, 0
    %v741 = vsel %vm504, %v688, 0
    %743 = vmatprep.subr.bf16.mxu0 0
    %744 = vmatpush1.bf16.msra.mxu0 0
    %745 = vmatprep.subr.bf16.mxu0 0
    %746 = vmatpush1.bf16.msra.mxu0 0
    %747 = vmatprep.subr.bf16.mxu0 0
    %748 = vmatpush1.bf16.msra.mxu0 0
    %749 = vmatprep.subr.bf16.mxu0 0
    %750 = vmatpush1.bf16.msra.mxu0 0
    %751 = vmatprep.subr.bf16.mxu0 0
    %752 = vmatpush1.bf16.msra.mxu0 0
    %753 = vmatprep.subr.bf16.mxu0 0
    %754 = vmatpush1.bf16.msra.mxu0 0
    %755 = vmatprep.subr.bf16.mxu0 0
    %756 = vmatpush1.bf16.msra.mxu0 0
    %757 = vmatprep.subr.bf16.mxu0 0
    %758 = vmatpush1.bf16.msra.mxu0 %v741
    %759 = vmatprep.subr.bf16.mxu0 0
    %760 = vmatpush2.bf16.msra.mxu0 0
    %761 = vmatprep.subr.bf16.mxu0 0
    %762 = vmatpush2.bf16.msra.mxu0 0
    %763 = vmatprep.subr.bf16.mxu0 0
    %764 = vmatpush2.bf16.msra.mxu0 0
    %765 = vmatprep.subr.bf16.mxu0 0
    %766 = vmatpush2.bf16.msra.mxu0 0
    %767 = vmatprep.subr.bf16.mxu0 0
    %768 = vmatpush2.bf16.msra.mxu0 0
    %769 = vmatprep.subr.bf16.mxu0 0
    %770 = vmatpush2.bf16.msra.mxu0 0
    %771 = vmatprep.subr.bf16.mxu0 0
    %772 = vmatpush2.bf16.msra.mxu0 0
    %773 = vmatprep.subr.bf16.mxu0 0
    %774 = vmatpush2.bf16.msra.mxu0 0
    %775 = vmatprep.mubr.bf16.mxu0 0
    %776 = vmatmul.mubr.bf16.gmra.mxu0 %v738
    %v777 = vpop.f32.mrf.mxu0
    %v778 = vadd.f32 0.0, %v777
    %v779 = vpop.f32.mrf.mxu0
    %v780 = vpop.f32.mrf.mxu0
    %v781 = vpop.f32.mrf.mxu0
    %782 = vdwg.mxu0
    %v784 = vsel %vm260, %v685, 0
    %v787 = vsel %vm504, %v689, 0
    %789 = vmatprep.subr.bf16.mxu0 0
    %790 = vmatpush1.bf16.msra.mxu0 0
    %791 = vmatprep.subr.bf16.mxu0 0
    %792 = vmatpush1.bf16.msra.mxu0 0
    %793 = vmatprep.subr.bf16.mxu0 0
    %794 = vmatpush1.bf16.msra.mxu0 0
    %795 = vmatprep.subr.bf16.mxu0 0
    %796 = vmatpush1.bf16.msra.mxu0 0
    %797 = vmatprep.subr.bf16.mxu0 0
    %798 = vmatpush1.bf16.msra.mxu0 0
    %799 = vmatprep.subr.bf16.mxu0 0
    %800 = vmatpush1.bf16.msra.mxu0 0
    %801 = vmatprep.subr.bf16.mxu0 0
    %802 = vmatpush1.bf16.msra.mxu0 0
    %803 = vmatprep.subr.bf16.mxu0 0
    %804 = vmatpush1.bf16.msra.mxu0 %v787
    %805 = vmatprep.subr.bf16.mxu0 0
    %806 = vmatpush2.bf16.msra.mxu0 0
    %807 = vmatprep.subr.bf16.mxu0 0
    %808 = vmatpush2.bf16.msra.mxu0 0
    %809 = vmatprep.subr.bf16.mxu0 0
    %810 = vmatpush2.bf16.msra.mxu0 0
    %811 = vmatprep.subr.bf16.mxu0 0
    %812 = vmatpush2.bf16.msra.mxu0 0
    %813 = vmatprep.subr.bf16.mxu0 0
    %814 = vmatpush2.bf16.msra.mxu0 0
    %815 = vmatprep.subr.bf16.mxu0 0
    %816 = vmatpush2.bf16.msra.mxu0 0
    %817 = vmatprep.subr.bf16.mxu0 0
    %818 = vmatpush2.bf16.msra.mxu0 0
    %819 = vmatprep.subr.bf16.mxu0 0
    %820 = vmatpush2.bf16.msra.mxu0 0
    %821 = vmatprep.mubr.bf16.mxu0 0
    %822 = vmatmul.mubr.bf16.gmra.mxu0 %v784
    %v823 = vpop.f32.mrf.mxu0
    %v824 = vadd.f32 0.0, %v823
    %v825 = vpop.f32.mrf.mxu0
    %v826 = vpop.f32.mrf.mxu0
    %v827 = vpop.f32.mrf.mxu0
    %828 = vdwg.mxu0
    %v830 = vsel %vm260, %v686, 0
    %v833 = vsel %vm504, %v690, 0
    %835 = vmatprep.subr.bf16.mxu0 0
    %836 = vmatpush1.bf16.msra.mxu0 0
    %837 = vmatprep.subr.bf16.mxu0 0
    %838 = vmatpush1.bf16.msra.mxu0 0
    %839 = vmatprep.subr.bf16.mxu0 0
    %840 = vmatpush1.bf16.msra.mxu0 0
    %841 = vmatprep.subr.bf16.mxu0 0
    %842 = vmatpush1.bf16.msra.mxu0 0
    %843 = vmatprep.subr.bf16.mxu0 0
    %844 = vmatpush1.bf16.msra.mxu0 0
    %845 = vmatprep.subr.bf16.mxu0 0
    %846 = vmatpush1.bf16.msra.mxu0 0
    %847 = vmatprep.subr.bf16.mxu0 0
    %848 = vmatpush1.bf16.msra.mxu0 0
    %849 = vmatprep.subr.bf16.mxu0 0
    %850 = vmatpush1.bf16.msra.mxu0 %v833
    %851 = vmatprep.subr.bf16.mxu0 0
    %852 = vmatpush2.bf16.msra.mxu0 0
    %853 = vmatprep.subr.bf16.mxu0 0
    %854 = vmatpush2.bf16.msra.mxu0 0
    %855 = vmatprep.subr.bf16.mxu0 0
    %856 = vmatpush2.bf16.msra.mxu0 0
    %857 = vmatprep.subr.bf16.mxu0 0
    %858 = vmatpush2.bf16.msra.mxu0 0
    %859 = vmatprep.subr.bf16.mxu0 0
    %860 = vmatpush2.bf16.msra.mxu0 0
    %861 = vmatprep.subr.bf16.mxu0 0
    %862 = vmatpush2.bf16.msra.mxu0 0
    %863 = vmatprep.subr.bf16.mxu0 0
    %864 = vmatpush2.bf16.msra.mxu0 0
    %865 = vmatprep.subr.bf16.mxu0 0
    %866 = vmatpush2.bf16.msra.mxu0 0
    %867 = vmatprep.mubr.bf16.mxu0 0
    %868 = vmatmul.mubr.bf16.gmra.mxu0 %v830
    %v869 = vpop.f32.mrf.mxu0
    %v870 = vadd.f32 0.0, %v869
    %v871 = vpop.f32.mrf.mxu0
    %v872 = vpop.f32.mrf.mxu0
    %v873 = vpop.f32.mrf.mxu0
    %874 = vdwg.mxu0
    %v875 = vsel %vm75, %v732, 0.0
    %v876 = vsel %vm75, %v778, 0.0
    %v877 = vadd.f32 %v875, %v876
    %v878 = vsel %vm75, %v824, 0.0
    %v879 = vadd.f32 %v877, %v878
    %v880 = vsel %vm75, %v870, 0.0
    %v881 = vadd.f32 %v879, %v880
    %883 = vrot.lane.b32.xlu0 %v158, 120
    %v884 = vpop.permute.xlu0 %883
    %886 = vrot.lane.b32.xlu0 %v158, 112
    %v887 = vpop.permute.xlu0 %886
    %889 = vrot.lane.b32.xlu0 %v158, 104
    %v890 = vpop.permute.xlu0 %889
    %892 = vrot.lane.b32.xlu0 %v158, 124
    %v893 = vpop.permute.xlu0 %892
    %894 = vrot.lane.b32.xlu0 %v884, 124
    %v895 = vpop.permute.xlu0 %894
    %896 = vrot.lane.b32.xlu0 %v887, 124
    %v897 = vpop.permute.xlu0 %896
    %898 = vrot.lane.b32.xlu0 %v890, 124
    %v899 = vpop.permute.xlu0 %898
    %904 = vrot.lane.b32.xlu0 %v158, 4
    %v905 = vpop.permute.xlu0 %904
    %906 = vrot.lane.b32.xlu0 %v884, 4
    %v907 = vpop.permute.xlu0 %906
    %908 = vrot.lane.b32.xlu0 %v887, 4
    %v909 = vpop.permute.xlu0 %908
    %910 = vrot.lane.b32.xlu0 %v890, 4
    %v911 = vpop.permute.xlu0 %910
    %v916 = vsel %vm202, %v893, %v905
    %v917 = vsel %vm202, %v895, %v907
    %v918 = vsel %vm202, %v897, %v909
    %v919 = vsel %vm202, %v899, %v911
    %v920 = vmul.f32 %v158, %v161
    %v921 = vmul.f32 %v884, %v161
    %v922 = vmul.f32 %v887, %v161
    %v923 = vmul.f32 %v890, %v161
    %v924 = vmul.f32 %v916, %v162
    %v925 = vmul.f32 %v917, %v162
    %v926 = vmul.f32 %v918, %v162
    %v927 = vmul.f32 %v919, %v162
    %v928 = vadd.f32 %v920, %v924
    %v929 = vadd.f32 %v921, %v925
    %v930 = vadd.f32 %v922, %v926
    %v931 = vadd.f32 %v923, %v927
    %932 = vrot.lane.b32.xlu0 %v158, 92
    %v933 = vpop.permute.xlu0 %932
    %934 = vrot.lane.b32.xlu0 %v884, 92
    %v935 = vpop.permute.xlu0 %934
    %938 = vrot.lane.b32.xlu0 %v158, 100
    %v939 = vpop.permute.xlu0 %938
    %940 = vrot.lane.b32.xlu0 %v884, 100
    %v941 = vpop.permute.xlu0 %940
    %v944 = vsel %vm202, %v933, %v939
    %v945 = vsel %vm202, %v935, %v941
    %v946 = vmul.f32 %v158, %v235
    %v947 = vmul.f32 %v884, %v235
    %v948 = vmul.f32 %v944, %v162
    %v949 = vmul.f32 %v945, %v162
    %952 = vrot.lane.b32.xlu0 %v948, 32
    %v953 = vpop.permute.xlu0 %952
    %954 = vrot.lane.b32.xlu0 %v949, 32
    %v955 = vpop.permute.xlu0 %954
    %v958 = vadd.f32 %v946, %v953
    %v959 = vadd.f32 %v947, %v955
    %v960 = vpack.c.bf16 %v928, %v928
    %v961 = vpack.c.bf16 %v929, %v929
    %v962 = vpack.c.bf16 %v930, %v930
    %v963 = vpack.c.bf16 %v931, %v931
    %v964 = vpack.c.bf16 %v958, %v958
    %v965 = vpack.c.bf16 %v959, %v959
    %967 = vrot.lane.b32.xlu0 %v964, 96
    %v968 = vpop.permute.xlu0 %967
    %v970 = vsel %vm260, %v960, 0
    %v973 = vsel %vm260, %v968, 0
    %975 = vmatprep.subr.bf16.mxu0 0
    %976 = vmatpush1.bf16.xpose.msra.mxu0 0
    %977 = vmatprep.subr.bf16.mxu0 0
    %978 = vmatpush1.bf16.xpose.msra.mxu0 0
    %979 = vmatprep.subr.bf16.mxu0 0
    %980 = vmatpush1.bf16.xpose.msra.mxu0 0
    %981 = vmatprep.subr.bf16.mxu0 0
    %982 = vmatpush1.bf16.xpose.msra.mxu0 0
    %983 = vmatprep.subr.bf16.mxu0 0
    %984 = vmatpush1.bf16.xpose.msra.mxu0 0
    %985 = vmatprep.subr.bf16.mxu0 0
    %986 = vmatpush1.bf16.xpose.msra.mxu0 0
    %987 = vmatprep.subr.bf16.mxu0 0
    %988 = vmatpush1.bf16.xpose.msra.mxu0 0
    %989 = vmatprep.subr.bf16.mxu0 0
    %990 = vmatpush1.bf16.xpose.msra.mxu0 %v973
    %991 = vmatprep.subr.bf16.mxu0 0
    %992 = vmatpush2.bf16.xpose.msra.mxu0 0
    %993 = vmatprep.subr.bf16.mxu0 0
    %994 = vmatpush2.bf16.xpose.msra.mxu0 0
    %995 = vmatprep.subr.bf16.mxu0 0
    %996 = vmatpush2.bf16.xpose.msra.mxu0 0
    %997 = vmatprep.subr.bf16.mxu0 0
    %998 = vmatpush2.bf16.xpose.msra.mxu0 0
    %999 = vmatprep.subr.bf16.mxu0 0
    %1000 = vmatpush2.bf16.xpose.msra.mxu0 0
    %1001 = vmatprep.subr.bf16.mxu0 0
    %1002 = vmatpush2.bf16.xpose.msra.mxu0 0
    %1003 = vmatprep.subr.bf16.mxu0 0
    %1004 = vmatpush2.bf16.xpose.msra.mxu0 0
    %1005 = vmatprep.subr.bf16.mxu0 0
    %1006 = vmatpush2.bf16.xpose.msra.mxu0 0
    %1007 = vmatprep.mubr.bf16.mxu0 0
    %1008 = vmatmul.mubr.bf16.gmra.mxu0 %v970
    %v1009 = vpop.f32.mrf.mxu0
    %v1010 = vadd.f32 0.0, %v1009
    %v1011 = vpop.f32.mrf.mxu0
    %v1012 = vpop.f32.mrf.mxu0
    %v1013 = vpop.f32.mrf.mxu0
    %1014 = vdwg.mxu0
    %v1016 = vsel %vm260, %v961, 0
    %1018 = vmatprep.subr.bf16.mxu0 0
    %1019 = vmatpush1.bf16.xpose.msra.mxu0 0
    %1020 = vmatprep.subr.bf16.mxu0 0
    %1021 = vmatpush1.bf16.xpose.msra.mxu0 0
    %1022 = vmatprep.subr.bf16.mxu0 0
    %1023 = vmatpush1.bf16.xpose.msra.mxu0 0
    %1024 = vmatprep.subr.bf16.mxu0 0
    %1025 = vmatpush1.bf16.xpose.msra.mxu0 0
    %1026 = vmatprep.subr.bf16.mxu0 0
    %1027 = vmatpush1.bf16.xpose.msra.mxu0 0
    %1028 = vmatprep.subr.bf16.mxu0 0
    %1029 = vmatpush1.bf16.xpose.msra.mxu0 0
    %1030 = vmatprep.subr.bf16.mxu0 0
    %1031 = vmatpush1.bf16.xpose.msra.mxu0 0
    %1032 = vmatprep.subr.bf16.mxu0 0
    %1033 = vmatpush1.bf16.xpose.msra.mxu0 %v973
    %1034 = vmatprep.subr.bf16.mxu0 0
    %1035 = vmatpush2.bf16.xpose.msra.mxu0 0
    %1036 = vmatprep.subr.bf16.mxu0 0
    %1037 = vmatpush2.bf16.xpose.msra.mxu0 0
    %1038 = vmatprep.subr.bf16.mxu0 0
    %1039 = vmatpush2.bf16.xpose.msra.mxu0 0
    %1040 = vmatprep.subr.bf16.mxu0 0
    %1041 = vmatpush2.bf16.xpose.msra.mxu0 0
    %1042 = vmatprep.subr.bf16.mxu0 0
    %1043 = vmatpush2.bf16.xpose.msra.mxu0 0
    %1044 = vmatprep.subr.bf16.mxu0 0
    %1045 = vmatpush2.bf16.xpose.msra.mxu0 0
    %1046 = vmatprep.subr.bf16.mxu0 0
    %1047 = vmatpush2.bf16.xpose.msra.mxu0 0
    %1048 = vmatprep.subr.bf16.mxu0 0
    %1049 = vmatpush2.bf16.xpose.msra.mxu0 0
    %1050 = vmatprep.mubr.bf16.mxu0 0
    %1051 = vmatmul.mubr.bf16.gmra.mxu0 %v1016
    %v1052 = vpop.f32.mrf.mxu0
    %v1053 = vadd.f32 0.0, %v1052
    %v1054 = vpop.f32.mrf.mxu0
    %v1055 = vpop.f32.mrf.mxu0
    %v1056 = vpop.f32.mrf.mxu0
    %1057 = vdwg.mxu0
    %1059 = vrot.lane.b32.xlu0 %v965, 96
    %v1060 = vpop.permute.xlu0 %1059
    %v1062 = vsel %vm260, %v962, 0
    %v1065 = vsel %vm260, %v1060, 0
    %1067 = vmatprep.subr.bf16.mxu0 0
    %1068 = vmatpush1.bf16.xpose.msra.mxu0 0
    %1069 = vmatprep.subr.bf16.mxu0 0
    %1070 = vmatpush1.bf16.xpose.msra.mxu0 0
    %1071 = vmatprep.subr.bf16.mxu0 0
    %1072 = vmatpush1.bf16.xpose.msra.mxu0 0
    %1073 = vmatprep.subr.bf16.mxu0 0
    %1074 = vmatpush1.bf16.xpose.msra.mxu0 0
    %1075 = vmatprep.subr.bf16.mxu0 0
    %1076 = vmatpush1.bf16.xpose.msra.mxu0 0
    %1077 = vmatprep.subr.bf16.mxu0 0
    %1078 = vmatpush1.bf16.xpose.msra.mxu0 0
    %1079 = vmatprep.subr.bf16.mxu0 0
    %1080 = vmatpush1.bf16.xpose.msra.mxu0 0
    %1081 = vmatprep.subr.bf16.mxu0 0
    %1082 = vmatpush1.bf16.xpose.msra.mxu0 %v1065
    %1083 = vmatprep.subr.bf16.mxu0 0
    %1084 = vmatpush2.bf16.xpose.msra.mxu0 0
    %1085 = vmatprep.subr.bf16.mxu0 0
    %1086 = vmatpush2.bf16.xpose.msra.mxu0 0
    %1087 = vmatprep.subr.bf16.mxu0 0
    %1088 = vmatpush2.bf16.xpose.msra.mxu0 0
    %1089 = vmatprep.subr.bf16.mxu0 0
    %1090 = vmatpush2.bf16.xpose.msra.mxu0 0
    %1091 = vmatprep.subr.bf16.mxu0 0
    %1092 = vmatpush2.bf16.xpose.msra.mxu0 0
    %1093 = vmatprep.subr.bf16.mxu0 0
    %1094 = vmatpush2.bf16.xpose.msra.mxu0 0
    %1095 = vmatprep.subr.bf16.mxu0 0
    %1096 = vmatpush2.bf16.xpose.msra.mxu0 0
    %1097 = vmatprep.subr.bf16.mxu0 0
    %1098 = vmatpush2.bf16.xpose.msra.mxu0 0
    %1099 = vmatprep.mubr.bf16.mxu0 0
    %1100 = vmatmul.mubr.bf16.gmra.mxu0 %v1062
    %v1101 = vpop.f32.mrf.mxu0
    %v1102 = vadd.f32 0.0, %v1101
    %v1103 = vpop.f32.mrf.mxu0
    %v1104 = vpop.f32.mrf.mxu0
    %v1105 = vpop.f32.mrf.mxu0
    %1106 = vdwg.mxu0
    %v1108 = vsel %vm260, %v963, 0
    %1110 = vmatprep.subr.bf16.mxu0 0
    %1111 = vmatpush1.bf16.xpose.msra.mxu0 0
    %1112 = vmatprep.subr.bf16.mxu0 0
    %1113 = vmatpush1.bf16.xpose.msra.mxu0 0
    %1114 = vmatprep.subr.bf16.mxu0 0
    %1115 = vmatpush1.bf16.xpose.msra.mxu0 0
    %1116 = vmatprep.subr.bf16.mxu0 0
    %1117 = vmatpush1.bf16.xpose.msra.mxu0 0
    %1118 = vmatprep.subr.bf16.mxu0 0
    %1119 = vmatpush1.bf16.xpose.msra.mxu0 0
    %1120 = vmatprep.subr.bf16.mxu0 0
    %1121 = vmatpush1.bf16.xpose.msra.mxu0 0
    %1122 = vmatprep.subr.bf16.mxu0 0
    %1123 = vmatpush1.bf16.xpose.msra.mxu0 0
    %1124 = vmatprep.subr.bf16.mxu0 0
    %1125 = vmatpush1.bf16.xpose.msra.mxu0 %v1065
    %1126 = vmatprep.subr.bf16.mxu0 0
    %1127 = vmatpush2.bf16.xpose.msra.mxu0 0
    %1128 = vmatprep.subr.bf16.mxu0 0
    %1129 = vmatpush2.bf16.xpose.msra.mxu0 0
    %1130 = vmatprep.subr.bf16.mxu0 0
    %1131 = vmatpush2.bf16.xpose.msra.mxu0 0
    %1132 = vmatprep.subr.bf16.mxu0 0
    %1133 = vmatpush2.bf16.xpose.msra.mxu0 0
    %1134 = vmatprep.subr.bf16.mxu0 0
    %1135 = vmatpush2.bf16.xpose.msra.mxu0 0
    %1136 = vmatprep.subr.bf16.mxu0 0
    %1137 = vmatpush2.bf16.xpose.msra.mxu0 0
    %1138 = vmatprep.subr.bf16.mxu0 0
    %1139 = vmatpush2.bf16.xpose.msra.mxu0 0
    %1140 = vmatprep.subr.bf16.mxu0 0
    %1141 = vmatpush2.bf16.xpose.msra.mxu0 0
    %1142 = vmatprep.mubr.bf16.mxu0 0
    %1143 = vmatmul.mubr.bf16.gmra.mxu0 %v1108
    %v1144 = vpop.f32.mrf.mxu0
    %v1145 = vadd.f32 0.0, %v1144
    %v1146 = vpop.f32.mrf.mxu0
    %v1147 = vpop.f32.mrf.mxu0
    %v1148 = vpop.f32.mrf.mxu0
    %1149 = vdwg.mxu0
    %v1150 = vsel %vm443, %v1010, -1e+30
    %v1151 = vsel %vm443, %v1053, -1e+30
    %v1152 = vsel %vm443, %v1102, -1e+30
    %v1153 = vsel %vm443, %v1145, -1e+30
    %v1154 = vsel %vm260, %v1150, -inf
    %1155 = vmax.xlane.f32.xlu0 %v1154
    %v1156 = vpop.xlane.xlu0 %1155
    %v1157 = vsel %vm260, %v1151, -inf
    %1158 = vmax.xlane.f32.xlu0 %v1157
    %v1159 = vpop.xlane.xlu0 %1158
    %v1160 = vsel %vm260, %v1152, -inf
    %1161 = vmax.xlane.f32.xlu0 %v1160
    %v1162 = vpop.xlane.xlu0 %1161
    %v1163 = vsel %vm260, %v1153, -inf
    %1164 = vmax.xlane.f32.xlu0 %v1163
    %v1165 = vpop.xlane.xlu0 %1164
    %v1166 = vsub.f32 %v1150, %v1156
    %v1167 = vsub.f32 %v1151, %v1159
    %v1168 = vsub.f32 %v1152, %v1162
    %v1169 = vsub.f32 %v1153, %v1165
    %v1170 = vmul.f32 %v1166, 1.442695
    %v1171 = vpow.pop %v1170
    %v1172 = vmul.f32 %v1167, 1.442695
    %v1173 = vpow.pop %v1172
    %v1174 = vmul.f32 %v1168, 1.442695
    %v1175 = vpow.pop %v1174
    %v1176 = vmul.f32 %v1169, 1.442695
    %v1177 = vpow.pop %v1176
    %v1178 = vsel %vm260, %v1171, 0.0
    %1179 = vadd.xlane.f32.xlu0 %v1178
    %v1180 = vpop.xlane.xlu0 %1179
    %v1181 = vsel %vm260, %v1173, 0.0
    %1182 = vadd.xlane.f32.xlu0 %v1181
    %v1183 = vpop.xlane.xlu0 %1182
    %v1184 = vsel %vm260, %v1175, 0.0
    %1185 = vadd.xlane.f32.xlu0 %v1184
    %v1186 = vpop.xlane.xlu0 %1185
    %v1187 = vsel %vm260, %v1177, 0.0
    %1188 = vadd.xlane.f32.xlu0 %v1187
    %v1189 = vpop.xlane.xlu0 %1188
    %v1190 = vrcp.pop %v1180
    %v1191 = vrcp.pop %v1183
    %v1192 = vrcp.pop %v1186
    %v1193 = vrcp.pop %v1189
    %v1194 = vmul.f32 %v1171, %v1190
    %v1195 = vmul.f32 %v1173, %v1191
    %v1196 = vmul.f32 %v1175, %v1192
    %v1197 = vmul.f32 %v1177, %v1193
    %v1198 = vpack.c.bf16 %v1194, %v1194
    %v1199 = vpack.c.bf16 %v1195, %v1195
    %v1200 = vpack.c.bf16 %v1196, %v1196
    %v1201 = vpack.c.bf16 %v1197, %v1197
    %v1202 = vpack.c.bf16 %v158, %v158
    %v1203 = vpack.c.bf16 %v884, %v884
    %1205 = vrot.lane.b32.xlu0 %v1202, 80
    %v1206 = vpop.permute.xlu0 %1205
    %v1208 = vsel %vm260, %v1198, 0
    %v1211 = vsel %vm504, %v1206, 0
    %1213 = vmatprep.subr.bf16.mxu0 0
    %1214 = vmatpush1.bf16.msra.mxu0 0
    %1215 = vmatprep.subr.bf16.mxu0 0
    %1216 = vmatpush1.bf16.msra.mxu0 0
    %1217 = vmatprep.subr.bf16.mxu0 0
    %1218 = vmatpush1.bf16.msra.mxu0 0
    %1219 = vmatprep.subr.bf16.mxu0 0
    %1220 = vmatpush1.bf16.msra.mxu0 0
    %1221 = vmatprep.subr.bf16.mxu0 0
    %1222 = vmatpush1.bf16.msra.mxu0 0
    %1223 = vmatprep.subr.bf16.mxu0 0
    %1224 = vmatpush1.bf16.msra.mxu0 0
    %1225 = vmatprep.subr.bf16.mxu0 0
    %1226 = vmatpush1.bf16.msra.mxu0 0
    %1227 = vmatprep.subr.bf16.mxu0 0
    %1228 = vmatpush1.bf16.msra.mxu0 %v1211
    %1229 = vmatprep.subr.bf16.mxu0 0
    %1230 = vmatpush2.bf16.msra.mxu0 0
    %1231 = vmatprep.subr.bf16.mxu0 0
    %1232 = vmatpush2.bf16.msra.mxu0 0
    %1233 = vmatprep.subr.bf16.mxu0 0
    %1234 = vmatpush2.bf16.msra.mxu0 0
    %1235 = vmatprep.subr.bf16.mxu0 0
    %1236 = vmatpush2.bf16.msra.mxu0 0
    %1237 = vmatprep.subr.bf16.mxu0 0
    %1238 = vmatpush2.bf16.msra.mxu0 0
    %1239 = vmatprep.subr.bf16.mxu0 0
    %1240 = vmatpush2.bf16.msra.mxu0 0
    %1241 = vmatprep.subr.bf16.mxu0 0
    %1242 = vmatpush2.bf16.msra.mxu0 0
    %1243 = vmatprep.subr.bf16.mxu0 0
    %1244 = vmatpush2.bf16.msra.mxu0 0
    %1245 = vmatprep.mubr.bf16.mxu0 0
    %1246 = vmatmul.mubr.bf16.gmra.mxu0 %v1208
    %v1247 = vpop.f32.mrf.mxu0
    %v1248 = vadd.f32 0.0, %v1247
    %v1249 = vpop.f32.mrf.mxu0
    %v1250 = vpop.f32.mrf.mxu0
    %v1251 = vpop.f32.mrf.mxu0
    %1252 = vdwg.mxu0
    %v1254 = vsel %vm260, %v1199, 0
    %1256 = vmatprep.subr.bf16.mxu0 0
    %1257 = vmatpush1.bf16.msra.mxu0 0
    %1258 = vmatprep.subr.bf16.mxu0 0
    %1259 = vmatpush1.bf16.msra.mxu0 0
    %1260 = vmatprep.subr.bf16.mxu0 0
    %1261 = vmatpush1.bf16.msra.mxu0 0
    %1262 = vmatprep.subr.bf16.mxu0 0
    %1263 = vmatpush1.bf16.msra.mxu0 0
    %1264 = vmatprep.subr.bf16.mxu0 0
    %1265 = vmatpush1.bf16.msra.mxu0 0
    %1266 = vmatprep.subr.bf16.mxu0 0
    %1267 = vmatpush1.bf16.msra.mxu0 0
    %1268 = vmatprep.subr.bf16.mxu0 0
    %1269 = vmatpush1.bf16.msra.mxu0 0
    %1270 = vmatprep.subr.bf16.mxu0 0
    %1271 = vmatpush1.bf16.msra.mxu0 %v1211
    %1272 = vmatprep.subr.bf16.mxu0 0
    %1273 = vmatpush2.bf16.msra.mxu0 0
    %1274 = vmatprep.subr.bf16.mxu0 0
    %1275 = vmatpush2.bf16.msra.mxu0 0
    %1276 = vmatprep.subr.bf16.mxu0 0
    %1277 = vmatpush2.bf16.msra.mxu0 0
    %1278 = vmatprep.subr.bf16.mxu0 0
    %1279 = vmatpush2.bf16.msra.mxu0 0
    %1280 = vmatprep.subr.bf16.mxu0 0
    %1281 = vmatpush2.bf16.msra.mxu0 0
    %1282 = vmatprep.subr.bf16.mxu0 0
    %1283 = vmatpush2.bf16.msra.mxu0 0
    %1284 = vmatprep.subr.bf16.mxu0 0
    %1285 = vmatpush2.bf16.msra.mxu0 0
    %1286 = vmatprep.subr.bf16.mxu0 0
    %1287 = vmatpush2.bf16.msra.mxu0 0
    %1288 = vmatprep.mubr.bf16.mxu0 0
    %1289 = vmatmul.mubr.bf16.gmra.mxu0 %v1254
    %v1290 = vpop.f32.mrf.mxu0
    %v1291 = vadd.f32 0.0, %v1290
    %v1292 = vpop.f32.mrf.mxu0
    %v1293 = vpop.f32.mrf.mxu0
    %v1294 = vpop.f32.mrf.mxu0
    %1295 = vdwg.mxu0
    %1297 = vrot.lane.b32.xlu0 %v1203, 80
    %v1298 = vpop.permute.xlu0 %1297
    %v1300 = vsel %vm260, %v1200, 0
    %v1303 = vsel %vm504, %v1298, 0
    %1305 = vmatprep.subr.bf16.mxu0 0
    %1306 = vmatpush1.bf16.msra.mxu0 0
    %1307 = vmatprep.subr.bf16.mxu0 0
    %1308 = vmatpush1.bf16.msra.mxu0 0
    %1309 = vmatprep.subr.bf16.mxu0 0
    %1310 = vmatpush1.bf16.msra.mxu0 0
    %1311 = vmatprep.subr.bf16.mxu0 0
    %1312 = vmatpush1.bf16.msra.mxu0 0
    %1313 = vmatprep.subr.bf16.mxu0 0
    %1314 = vmatpush1.bf16.msra.mxu0 0
    %1315 = vmatprep.subr.bf16.mxu0 0
    %1316 = vmatpush1.bf16.msra.mxu0 0
    %1317 = vmatprep.subr.bf16.mxu0 0
    %1318 = vmatpush1.bf16.msra.mxu0 0
    %1319 = vmatprep.subr.bf16.mxu0 0
    %1320 = vmatpush1.bf16.msra.mxu0 %v1303
    %1321 = vmatprep.subr.bf16.mxu0 0
    %1322 = vmatpush2.bf16.msra.mxu0 0
    %1323 = vmatprep.subr.bf16.mxu0 0
    %1324 = vmatpush2.bf16.msra.mxu0 0
    %1325 = vmatprep.subr.bf16.mxu0 0
    %1326 = vmatpush2.bf16.msra.mxu0 0
    %1327 = vmatprep.subr.bf16.mxu0 0
    %1328 = vmatpush2.bf16.msra.mxu0 0
    %1329 = vmatprep.subr.bf16.mxu0 0
    %1330 = vmatpush2.bf16.msra.mxu0 0
    %1331 = vmatprep.subr.bf16.mxu0 0
    %1332 = vmatpush2.bf16.msra.mxu0 0
    %1333 = vmatprep.subr.bf16.mxu0 0
    %1334 = vmatpush2.bf16.msra.mxu0 0
    %1335 = vmatprep.subr.bf16.mxu0 0
    %1336 = vmatpush2.bf16.msra.mxu0 0
    %1337 = vmatprep.mubr.bf16.mxu0 0
    %1338 = vmatmul.mubr.bf16.gmra.mxu0 %v1300
    %v1339 = vpop.f32.mrf.mxu0
    %v1340 = vadd.f32 0.0, %v1339
    %v1341 = vpop.f32.mrf.mxu0
    %v1342 = vpop.f32.mrf.mxu0
    %v1343 = vpop.f32.mrf.mxu0
    %1344 = vdwg.mxu0
    %v1346 = vsel %vm260, %v1201, 0
    %1348 = vmatprep.subr.bf16.mxu0 0
    %1349 = vmatpush1.bf16.msra.mxu0 0
    %1350 = vmatprep.subr.bf16.mxu0 0
    %1351 = vmatpush1.bf16.msra.mxu0 0
    %1352 = vmatprep.subr.bf16.mxu0 0
    %1353 = vmatpush1.bf16.msra.mxu0 0
    %1354 = vmatprep.subr.bf16.mxu0 0
    %1355 = vmatpush1.bf16.msra.mxu0 0
    %1356 = vmatprep.subr.bf16.mxu0 0
    %1357 = vmatpush1.bf16.msra.mxu0 0
    %1358 = vmatprep.subr.bf16.mxu0 0
    %1359 = vmatpush1.bf16.msra.mxu0 0
    %1360 = vmatprep.subr.bf16.mxu0 0
    %1361 = vmatpush1.bf16.msra.mxu0 0
    %1362 = vmatprep.subr.bf16.mxu0 0
    %1363 = vmatpush1.bf16.msra.mxu0 %v1303
    %1364 = vmatprep.subr.bf16.mxu0 0
    %1365 = vmatpush2.bf16.msra.mxu0 0
    %1366 = vmatprep.subr.bf16.mxu0 0
    %1367 = vmatpush2.bf16.msra.mxu0 0
    %1368 = vmatprep.subr.bf16.mxu0 0
    %1369 = vmatpush2.bf16.msra.mxu0 0
    %1370 = vmatprep.subr.bf16.mxu0 0
    %1371 = vmatpush2.bf16.msra.mxu0 0
    %1372 = vmatprep.subr.bf16.mxu0 0
    %1373 = vmatpush2.bf16.msra.mxu0 0
    %1374 = vmatprep.subr.bf16.mxu0 0
    %1375 = vmatpush2.bf16.msra.mxu0 0
    %1376 = vmatprep.subr.bf16.mxu0 0
    %1377 = vmatpush2.bf16.msra.mxu0 0
    %1378 = vmatprep.subr.bf16.mxu0 0
    %1379 = vmatpush2.bf16.msra.mxu0 0
    %1380 = vmatprep.mubr.bf16.mxu0 0
    %1381 = vmatmul.mubr.bf16.gmra.mxu0 %v1346
    %v1382 = vpop.f32.mrf.mxu0
    %v1383 = vadd.f32 0.0, %v1382
    %v1384 = vpop.f32.mrf.mxu0
    %v1385 = vpop.f32.mrf.mxu0
    %v1386 = vpop.f32.mrf.mxu0
    %1387 = vdwg.mxu0
    %v1388 = vpack.c.bf16 %v1248, %v1248
    %v1389 = vpack.c.bf16 %v1291, %v1291
    %v1390 = vpack.c.bf16 %v1340, %v1340
    %v1391 = vpack.c.bf16 %v1383, %v1383
    %v1392 = vld [vmem:[%s5] sm:$0xf]
    %v1393 = vld [vmem:[%s5 + $0x4] sm:$0xf]
    %v1394 = vld [vmem:[%s5 + $0x8] sm:$0xf]
    %v1395 = vld [vmem:[%s5 + $0xc] sm:$0xf]
    %v1397 = vsel %vm260, %v1388, 0
    %v1400 = vsel %vm504, %v1392, 0
    %1402 = vmatprep.subr.bf16.mxu0 0
    %1403 = vmatpush1.bf16.msra.mxu0 0
    %1404 = vmatprep.subr.bf16.mxu0 0
    %1405 = vmatpush1.bf16.msra.mxu0 0
    %1406 = vmatprep.subr.bf16.mxu0 0
    %1407 = vmatpush1.bf16.msra.mxu0 0
    %1408 = vmatprep.subr.bf16.mxu0 0
    %1409 = vmatpush1.bf16.msra.mxu0 0
    %1410 = vmatprep.subr.bf16.mxu0 0
    %1411 = vmatpush1.bf16.msra.mxu0 0
    %1412 = vmatprep.subr.bf16.mxu0 0
    %1413 = vmatpush1.bf16.msra.mxu0 0
    %1414 = vmatprep.subr.bf16.mxu0 0
    %1415 = vmatpush1.bf16.msra.mxu0 0
    %1416 = vmatprep.subr.bf16.mxu0 0
    %1417 = vmatpush1.bf16.msra.mxu0 %v1400
    %1418 = vmatprep.subr.bf16.mxu0 0
    %1419 = vmatpush2.bf16.msra.mxu0 0
    %1420 = vmatprep.subr.bf16.mxu0 0
    %1421 = vmatpush2.bf16.msra.mxu0 0
    %1422 = vmatprep.subr.bf16.mxu0 0
    %1423 = vmatpush2.bf16.msra.mxu0 0
    %1424 = vmatprep.subr.bf16.mxu0 0
    %1425 = vmatpush2.bf16.msra.mxu0 0
    %1426 = vmatprep.subr.bf16.mxu0 0
    %1427 = vmatpush2.bf16.msra.mxu0 0
    %1428 = vmatprep.subr.bf16.mxu0 0
    %1429 = vmatpush2.bf16.msra.mxu0 0
    %1430 = vmatprep.subr.bf16.mxu0 0
    %1431 = vmatpush2.bf16.msra.mxu0 0
    %1432 = vmatprep.subr.bf16.mxu0 0
    %1433 = vmatpush2.bf16.msra.mxu0 0
    %1434 = vmatprep.mubr.bf16.mxu0 0
    %1435 = vmatmul.mubr.bf16.gmra.mxu0 %v1397
    %v1436 = vpop.f32.mrf.mxu0
    %v1437 = vadd.f32 0.0, %v1436
    %v1438 = vpop.f32.mrf.mxu0
    %v1439 = vpop.f32.mrf.mxu0
    %v1440 = vpop.f32.mrf.mxu0
    %1441 = vdwg.mxu0
    %v1443 = vsel %vm260, %v1389, 0
    %v1446 = vsel %vm504, %v1393, 0
    %1448 = vmatprep.subr.bf16.mxu0 0
    %1449 = vmatpush1.bf16.msra.mxu0 0
    %1450 = vmatprep.subr.bf16.mxu0 0
    %1451 = vmatpush1.bf16.msra.mxu0 0
    %1452 = vmatprep.subr.bf16.mxu0 0
    %1453 = vmatpush1.bf16.msra.mxu0 0
    %1454 = vmatprep.subr.bf16.mxu0 0
    %1455 = vmatpush1.bf16.msra.mxu0 0
    %1456 = vmatprep.subr.bf16.mxu0 0
    %1457 = vmatpush1.bf16.msra.mxu0 0
    %1458 = vmatprep.subr.bf16.mxu0 0
    %1459 = vmatpush1.bf16.msra.mxu0 0
    %1460 = vmatprep.subr.bf16.mxu0 0
    %1461 = vmatpush1.bf16.msra.mxu0 0
    %1462 = vmatprep.subr.bf16.mxu0 0
    %1463 = vmatpush1.bf16.msra.mxu0 %v1446
    %1464 = vmatprep.subr.bf16.mxu0 0
    %1465 = vmatpush2.bf16.msra.mxu0 0
    %1466 = vmatprep.subr.bf16.mxu0 0
    %1467 = vmatpush2.bf16.msra.mxu0 0
    %1468 = vmatprep.subr.bf16.mxu0 0
    %1469 = vmatpush2.bf16.msra.mxu0 0
    %1470 = vmatprep.subr.bf16.mxu0 0
    %1471 = vmatpush2.bf16.msra.mxu0 0
    %1472 = vmatprep.subr.bf16.mxu0 0
    %1473 = vmatpush2.bf16.msra.mxu0 0
    %1474 = vmatprep.subr.bf16.mxu0 0
    %1475 = vmatpush2.bf16.msra.mxu0 0
    %1476 = vmatprep.subr.bf16.mxu0 0
    %1477 = vmatpush2.bf16.msra.mxu0 0
    %1478 = vmatprep.subr.bf16.mxu0 0
    %1479 = vmatpush2.bf16.msra.mxu0 0
    %1480 = vmatprep.mubr.bf16.mxu0 0
    %1481 = vmatmul.mubr.bf16.gmra.mxu0 %v1443
    %v1482 = vpop.f32.mrf.mxu0
    %v1483 = vadd.f32 0.0, %v1482
    %v1484 = vpop.f32.mrf.mxu0
    %v1485 = vpop.f32.mrf.mxu0
    %v1486 = vpop.f32.mrf.mxu0
    %1487 = vdwg.mxu0
    %v1489 = vsel %vm260, %v1390, 0
    %v1492 = vsel %vm504, %v1394, 0
    %1494 = vmatprep.subr.bf16.mxu0 0
    %1495 = vmatpush1.bf16.msra.mxu0 0
    %1496 = vmatprep.subr.bf16.mxu0 0
    %1497 = vmatpush1.bf16.msra.mxu0 0
    %1498 = vmatprep.subr.bf16.mxu0 0
    %1499 = vmatpush1.bf16.msra.mxu0 0
    %1500 = vmatprep.subr.bf16.mxu0 0
    %1501 = vmatpush1.bf16.msra.mxu0 0
    %1502 = vmatprep.subr.bf16.mxu0 0
    %1503 = vmatpush1.bf16.msra.mxu0 0
    %1504 = vmatprep.subr.bf16.mxu0 0
    %1505 = vmatpush1.bf16.msra.mxu0 0
    %1506 = vmatprep.subr.bf16.mxu0 0
    %1507 = vmatpush1.bf16.msra.mxu0 0
    %1508 = vmatprep.subr.bf16.mxu0 0
    %1509 = vmatpush1.bf16.msra.mxu0 %v1492
    %1510 = vmatprep.subr.bf16.mxu0 0
    %1511 = vmatpush2.bf16.msra.mxu0 0
    %1512 = vmatprep.subr.bf16.mxu0 0
    %1513 = vmatpush2.bf16.msra.mxu0 0
    %1514 = vmatprep.subr.bf16.mxu0 0
    %1515 = vmatpush2.bf16.msra.mxu0 0
    %1516 = vmatprep.subr.bf16.mxu0 0
    %1517 = vmatpush2.bf16.msra.mxu0 0
    %1518 = vmatprep.subr.bf16.mxu0 0
    %1519 = vmatpush2.bf16.msra.mxu0 0
    %1520 = vmatprep.subr.bf16.mxu0 0
    %1521 = vmatpush2.bf16.msra.mxu0 0
    %1522 = vmatprep.subr.bf16.mxu0 0
    %1523 = vmatpush2.bf16.msra.mxu0 0
    %1524 = vmatprep.subr.bf16.mxu0 0
    %1525 = vmatpush2.bf16.msra.mxu0 0
    %1526 = vmatprep.mubr.bf16.mxu0 0
    %1527 = vmatmul.mubr.bf16.gmra.mxu0 %v1489
    %v1528 = vpop.f32.mrf.mxu0
    %v1529 = vadd.f32 0.0, %v1528
    %v1530 = vpop.f32.mrf.mxu0
    %v1531 = vpop.f32.mrf.mxu0
    %v1532 = vpop.f32.mrf.mxu0
    %1533 = vdwg.mxu0
    %v1535 = vsel %vm260, %v1391, 0
    %v1538 = vsel %vm504, %v1395, 0
    %1540 = vmatprep.subr.bf16.mxu0 0
    %1541 = vmatpush1.bf16.msra.mxu0 0
    %1542 = vmatprep.subr.bf16.mxu0 0
    %1543 = vmatpush1.bf16.msra.mxu0 0
    %1544 = vmatprep.subr.bf16.mxu0 0
    %1545 = vmatpush1.bf16.msra.mxu0 0
    %1546 = vmatprep.subr.bf16.mxu0 0
    %1547 = vmatpush1.bf16.msra.mxu0 0
    %1548 = vmatprep.subr.bf16.mxu0 0
    %1549 = vmatpush1.bf16.msra.mxu0 0
    %1550 = vmatprep.subr.bf16.mxu0 0
    %1551 = vmatpush1.bf16.msra.mxu0 0
    %1552 = vmatprep.subr.bf16.mxu0 0
    %1553 = vmatpush1.bf16.msra.mxu0 0
    %1554 = vmatprep.subr.bf16.mxu0 0
    %1555 = vmatpush1.bf16.msra.mxu0 %v1538
    %1556 = vmatprep.subr.bf16.mxu0 0
    %1557 = vmatpush2.bf16.msra.mxu0 0
    %1558 = vmatprep.subr.bf16.mxu0 0
    %1559 = vmatpush2.bf16.msra.mxu0 0
    %1560 = vmatprep.subr.bf16.mxu0 0
    %1561 = vmatpush2.bf16.msra.mxu0 0
    %1562 = vmatprep.subr.bf16.mxu0 0
    %1563 = vmatpush2.bf16.msra.mxu0 0
    %1564 = vmatprep.subr.bf16.mxu0 0
    %1565 = vmatpush2.bf16.msra.mxu0 0
    %1566 = vmatprep.subr.bf16.mxu0 0
    %1567 = vmatpush2.bf16.msra.mxu0 0
    %1568 = vmatprep.subr.bf16.mxu0 0
    %1569 = vmatpush2.bf16.msra.mxu0 0
    %1570 = vmatprep.subr.bf16.mxu0 0
    %1571 = vmatpush2.bf16.msra.mxu0 0
    %1572 = vmatprep.mubr.bf16.mxu0 0
    %1573 = vmatmul.mubr.bf16.gmra.mxu0 %v1535
    %v1574 = vpop.f32.mrf.mxu0
    %v1575 = vadd.f32 0.0, %v1574
    %v1576 = vpop.f32.mrf.mxu0
    %v1577 = vpop.f32.mrf.mxu0
    %v1578 = vpop.f32.mrf.mxu0
    %1579 = vdwg.mxu0
    %v1580 = vsel %vm75, %v1437, 0.0
    %v1581 = vsel %vm75, %v1483, 0.0
    %v1582 = vadd.f32 %v1580, %v1581
    %v1583 = vsel %vm75, %v1529, 0.0
    %v1584 = vadd.f32 %v1582, %v1583
    %v1585 = vsel %vm75, %v1575, 0.0
    %v1586 = vadd.f32 %v1584, %v1585
    %v1587 = vadd.f32 %v71, %v881
    %v1588 = vadd.f32 %v72, %v1586
    %v1589 = vmul.f32 %v1587, %v1587
    %v1590 = vmul.f32 %v1588, %v1588
    %v1591 = vsel %vm75, %v1589, 0.0
    %1592 = vadd.xlane.f32.xlu0 %v1591
    %v1593 = vpop.xlane.xlu0 %1592
    %v1594 = vsel %vm75, %v1590, 0.0
    %1595 = vadd.xlane.f32.xlu0 %v1594
    %v1596 = vpop.xlane.xlu0 %1595
    %v1597 = vmul.f32 %v1593, %v82
    %v1598 = vmul.f32 %v1596, %v82
    %v1599 = vadd.f32 %v1597, 1e-05
    %v1600 = vadd.f32 %v1598, 1e-05
    %v1601 = vrsqrt.pop %v1599
    %v1602 = vrsqrt.pop %v1600
    %v1603 = vmul.f32 %v1587, %v1601
    %v1604 = vmul.f32 %v1588, %v1602
    %v1605 = vld [vmem:[%s6] sm:$0x1]
    %v1607 = vlaneseq
    %v1608 = vshrl.u32 %v1607, 7
    %v1609 = vsub.s32 0, %v1608
    %v1610 = vrot.slane %v1605, %v1609
    %v1612 = vmul.f32 %v1603, %v1610
    %v1613 = vmul.f32 %v1604, %v1610
    %v1614 = vpack.c.bf16 %v1613, %v1612
    %v1615 = vld [vmem:[#allocation7] sm:$0xf]
    %v1616 = vld [vmem:[#allocation7 + $0x4] sm:$0xf]
    %v1617 = vld [vmem:[#allocation7 + $0x8] sm:$0xf]
    %v1618 = vld [vmem:[#allocation7 + $0xc] sm:$0xf]
    %v1623 = vunpack.c.l.b16 %v1615
    %v1624 = vunpack.c.l.b16 %v1616
    %v1625 = vunpack.c.l.b16 %v1617
    %v1626 = vunpack.c.l.b16 %v1618
    %v1627 = vpack.c.b16 %v1624, %v1623
    %v1628 = vpack.c.b16 %v1626, %v1625
    %v1632 = vsel %vm75, %v1614, 0
    %1634 = vmatprep.subr.bf16.mxu0 0
    %1635 = vmatpush1.bf16.msra.mxu0 0
    %1636 = vmatprep.subr.bf16.mxu0 0
    %1637 = vmatpush1.bf16.msra.mxu0 0
    %1638 = vmatprep.subr.bf16.mxu0 0
    %1639 = vmatpush1.bf16.msra.mxu0 0
    %1640 = vmatprep.subr.bf16.mxu0 0
    %1641 = vmatpush1.bf16.msra.mxu0 0
    %1642 = vmatprep.subr.bf16.mxu0 0
    %1643 = vmatpush1.bf16.msra.mxu0 0
    %1644 = vmatprep.subr.bf16.mxu0 0
    %1645 = vmatpush1.bf16.msra.mxu0 0
    %1646 = vmatprep.subr.bf16.mxu0 0
    %1647 = vmatpush1.bf16.msra.mxu0 %v1628
    %1648 = vmatprep.subr.bf16.mxu0 0
    %1649 = vmatpush1.bf16.msra.mxu0 %v1627
    %1650 = vmatprep.subr.bf16.mxu0 0
    %1651 = vmatpush2.bf16.msra.mxu0 0
    %1652 = vmatprep.subr.bf16.mxu0 0
    %1653 = vmatpush2.bf16.msra.mxu0 0
    %1654 = vmatprep.subr.bf16.mxu0 0
    %1655 = vmatpush2.bf16.msra.mxu0 0
    %1656 = vmatprep.subr.bf16.mxu0 0
    %1657 = vmatpush2.bf16.msra.mxu0 0
    %1658 = vmatprep.subr.bf16.mxu0 0
    %1659 = vmatpush2.bf16.msra.mxu0 0
    %1660 = vmatprep.subr.bf16.mxu0 0
    %1661 = vmatpush2.bf16.msra.mxu0 0
    %1662 = vmatprep.subr.bf16.mxu0 0
    %1663 = vmatpush2.bf16.msra.mxu0 0
    %1664 = vmatprep.subr.bf16.mxu0 0
    %1665 = vmatpush2.bf16.msra.mxu0 0
    %1666 = vmatprep.mubr.bf16.mxu0 0
    %1667 = vmatmul.mubr.bf16.gmra.mxu0 %v1632
    %v1668 = vpop.f32.mrf.mxu0
    %v1669 = vadd.f32 0.0, %v1668
    %v1670 = vpop.f32.mrf.mxu0
    %v1671 = vpop.f32.mrf.mxu0
    %v1672 = vadd.f32 0.0, %v1671
    %v1673 = vpop.f32.mrf.mxu0
    %1674 = vdwg.mxu0
    %v1675 = vxor.u32 %v1669, 2147483648
    %v1676 = vxor.u32 %v1672, 2147483648
    %v1677 = vmul.f32 %v1675, 1.442695
    %v1678 = vpow.pop %v1677
    %v1679 = vmul.f32 %v1676, 1.442695
    %v1680 = vpow.pop %v1679
    %v1681 = vadd.f32 %v1678, 1.0
    %v1682 = vadd.f32 %v1680, 1.0
    %v1683 = vrcp.pop %v1681
    %v1684 = vmul.f32 1.0, %v1683
    %v1685 = vrcp.pop %v1682
    %v1686 = vmul.f32 1.0, %v1685
    %v1687 = vmul.f32 %v1669, %v1684
    %v1688 = vmul.f32 %v1672, %v1686
    %1691 = vrot.lane.b32.xlu0 %v1669, 64
    %v1692 = vpop.permute.xlu0 %1691
    %1693 = vrot.lane.b32.xlu0 %v1672, 64
    %v1694 = vpop.permute.xlu0 %1693
    %v1697 = vmul.f32 %v1687, %v1692
    %v1698 = vmul.f32 %v1688, %v1694
    %v1699 = vpack.c.bf16 %v1698, %v1697
    %v1700 = vld [vmem:[%s8] sm:$0xf]
    %v1701 = vld [vmem:[%s8 + $0x4] sm:$0xf]
    %v1702 = vld [vmem:[%s8 + $0x8] sm:$0xf]
    %v1703 = vld [vmem:[%s8 + $0xc] sm:$0xf]
    %v1704 = vld [vmem:[%s8 + $0x10] sm:$0xf]
    %v1705 = vld [vmem:[%s8 + $0x14] sm:$0xf]
    %v1706 = vld [vmem:[%s8 + $0x18] sm:$0xf]
    %v1707 = vld [vmem:[%s8 + $0x1c] sm:$0xf]
    %v1716 = vunpack.c.l.b16 %v1700
    %v1717 = vunpack.c.l.b16 %v1701
    %v1718 = vunpack.c.l.b16 %v1702
    %v1719 = vunpack.c.l.b16 %v1703
    %v1720 = vunpack.c.l.b16 %v1704
    %v1721 = vunpack.c.l.b16 %v1705
    %v1722 = vunpack.c.l.b16 %v1706
    %v1723 = vunpack.c.l.b16 %v1707
    %v1724 = vpack.c.b16 %v1717, %v1716
    %v1725 = vpack.c.b16 %v1719, %v1718
    %v1726 = vpack.c.b16 %v1721, %v1720
    %v1727 = vpack.c.b16 %v1723, %v1722
    %vm1732 = vcmask 523264
    %v1734 = vsel %vm1732, %v1699, 0
    %1736 = vmatprep.subr.bf16.mxu0 0
    %1737 = vmatpush1.bf16.msra.mxu0 0
    %1738 = vmatprep.subr.bf16.mxu0 0
    %1739 = vmatpush1.bf16.msra.mxu0 0
    %1740 = vmatprep.subr.bf16.mxu0 0
    %1741 = vmatpush1.bf16.msra.mxu0 0
    %1742 = vmatprep.subr.bf16.mxu0 0
    %1743 = vmatpush1.bf16.msra.mxu0 0
    %1744 = vmatprep.subr.bf16.mxu0 0
    %1745 = vmatpush1.bf16.msra.mxu0 %v1727
    %1746 = vmatprep.subr.bf16.mxu0 0
    %1747 = vmatpush1.bf16.msra.mxu0 %v1726
    %1748 = vmatprep.subr.bf16.mxu0 0
    %1749 = vmatpush1.bf16.msra.mxu0 %v1725
    %1750 = vmatprep.subr.bf16.mxu0 0
    %1751 = vmatpush1.bf16.msra.mxu0 %v1724
    %1752 = vmatprep.subr.bf16.mxu0 0
    %1753 = vmatpush2.bf16.msra.mxu0 0
    %1754 = vmatprep.subr.bf16.mxu0 0
    %1755 = vmatpush2.bf16.msra.mxu0 0
    %1756 = vmatprep.subr.bf16.mxu0 0
    %1757 = vmatpush2.bf16.msra.mxu0 0
    %1758 = vmatprep.subr.bf16.mxu0 0
    %1759 = vmatpush2.bf16.msra.mxu0 0
    %1760 = vmatprep.subr.bf16.mxu0 0
    %1761 = vmatpush2.bf16.msra.mxu0 0
    %1762 = vmatprep.subr.bf16.mxu0 0
    %1763 = vmatpush2.bf16.msra.mxu0 0
    %1764 = vmatprep.subr.bf16.mxu0 0
    %1765 = vmatpush2.bf16.msra.mxu0 0
    %1766 = vmatprep.subr.bf16.mxu0 0
    %1767 = vmatpush2.bf16.msra.mxu0 0
    %1768 = vmatprep.mubr.bf16.mxu0 0
    %1769 = vmatmul.mubr.bf16.gmra.mxu0 %v1734
    %v1770 = vpop.f32.mrf.mxu0
    %v1771 = vadd.f32 0.0, %v1770
    %v1772 = vpop.f32.mrf.mxu0
    %v1773 = vpop.f32.mrf.mxu0
    %v1774 = vadd.f32 0.0, %v1773
    %v1775 = vpop.f32.mrf.mxu0
    %1776 = vdwg.mxu0
    %v1777 = vadd.f32 %v1587, %v1771
    %v1778 = vadd.f32 %v1588, %v1774
    %1779 = vst.msk [vmem:[#allocation8] sm:$0xff] %vm75, %v1777
    %1780 = vst.msk [vmem:[#allocation8 + $0x8] sm:$0xff] %vm75, %v1778
    // Predicated region
    $region50: #{cogvlm_decoder_layer.1} parent=1 // pred_check
      _
    $region51: #{cogvlm_decoder_layer.1} parent=1 // pred_check_branch
      %1782 = sbr.rel (0) target = $region53
    $region52: #{cogvlm_decoder_layer.1} parent=1 // pred_region
      %s1784 = ssub.s32 256, 256
      %1785 = vsyncadd [#allocation4], %s1784
      %s1786 = sshll.u32 [#allocation8], 4
      %s1787 = int_to_ptr.vmem [resolvable:$true] %s1786
      %1792 = dma.vmem_to_hbm [thread:$0]  %s1787, 256, %s9, [#allocation4], 128, 128, 8
    $region53: #{cogvlm_decoder_layer.1} parent=1 // pred_fallthru
      _
    // Predicated region
    $region54: #{cogvlm_decoder_layer.1} parent=1 // pred_check
      _
    $region55: #{cogvlm_decoder_layer.1} parent=1 // pred_check_branch
      %1794 = sbr.rel (0) target = $region57
    $region56: #{cogvlm_decoder_layer.1} parent=1 // pred_region
      %1795 = dma.done [#allocation4], 256
    $region57: #{cogvlm_decoder_layer.1} parent=1 // pred_fallthru
      _
    %1796 = vsyncpa [#allocation3], 1
    %1797 = vsyncpa [#allocation6], 1
    %1798 = vsyncpa [#allocation4], 1

</llo_original>
